<compile_context>
chip_gen: v7x
topology: tpu7x:2x2x1
jax: 0.10.0
libtpu: 0.0.40
codegen_flags: <defaults>
</compile_context>

<pallas_src>
import functools

import jax
import jax.numpy as jnp
from jax.experimental import pallas as pl
from jax.experimental.pallas import tpu as pltpu

D_IN = 784          # 1*28*28 after nn.Flatten (NCHW row-major, same as PyTorch)
HIDDEN = 377
HIDDEN_PAD = 384    # 3 * 128 -> lane-dense hidden dim
N_OUT = 10
N_OUT_PAD = 128     # lane-dense output (unmasked vst); sliced back to 10 outside
TILE_M = 1024       # batch tile: multiple of 128; ~10 MB VMEM at f32 incl. buffers


def _round_up(n, m):
    return ((n + m - 1) // m) * m


def mlp_kernel(x_ref, w1_ref, b1_ref, w2_ref, b2_ref, o_ref):
    # Hidden layer on the MXU: (tm, 784) @ (784, 384), f32 accumulation.
    h = jnp.dot(x_ref[...], w1_ref[...], preferred_element_type=jnp.float32)
    # Bias + ReLU in f32 on the VPU (v5e has no bf16 VALU path).
    h = jnp.maximum(h + b1_ref[...], 0.0)
    # Output layer: (tm, 384) @ (384, 128), f32 accumulation.
    out = jnp.dot(h.astype(w2_ref.dtype), w2_ref[...],
                  preferred_element_type=jnp.float32)
    # Only the final store rounds to the (possibly bf16) output dtype.
    o_ref[...] = (out + b2_ref[...]).astype(o_ref.dtype)


def prepare_params(w1, b1, w2, b2, compute_dtype=jnp.bfloat16):
    """One-time conversion of PyTorch-layout params to kernel layout.

    w1: (377, 784), b1: (377,), w2: (10, 377), b2: (10,)  [nn.Linear layout]
    Returns transposed (in, out) weights zero-padded to lane-dense shapes:
      w1p (784, 384), b1p (1, 384), w2p (384, 128), b2p (1, 128).
    Zero padding is numerically exact: ReLU(0+0)=0 so padded hidden lanes add
    nothing to the second matmul, and padded output lanes are discarded.
    """
    w1p = jnp.zeros((D_IN, HIDDEN_PAD), compute_dtype).at[:, :HIDDEN].set(
        jnp.transpose(w1).astype(compute_dtype))
    b1p = jnp.zeros((1, HIDDEN_PAD), jnp.float32).at[:, :HIDDEN].set(
        b1.astype(jnp.float32))
    w2p = jnp.zeros((HIDDEN_PAD, N_OUT_PAD), compute_dtype).at[:HIDDEN, :N_OUT].set(
        jnp.transpose(w2).astype(compute_dtype))
    b2p = jnp.zeros((1, N_OUT_PAD), jnp.float32).at[:, :N_OUT].set(
        b2.astype(jnp.float32))
    return w1p, b1p, w2p, b2p


@functools.partial(jax.jit, static_argnames=("tile_m",))
def mlp300k_forward(x, w1p, b1p, w2p, b2p, *, tile_m=TILE_M):
    """x: (B, 1, 28, 28) f32 NCHW (like the PyTorch module). Returns (B, 10) f32 logits."""
    B = x.shape[0]
    compute_dtype = w1p.dtype
    x_flat = x.reshape(B, D_IN).astype(compute_dtype)   # nn.Flatten + matmul dtype

    # Batch tile:
    #  * bf16 vregs pack [16,128] along sublanes -> round tiny batches to 16 rows.
    #  * for larger batches cap the tile so the grid has >= 2 steps (both v7x TCs).
    #  * NO jnp.pad: ragged last block; OOB rows are masked on the output store.
    min_rows = 16 if jnp.dtype(compute_dtype).itemsize < 4 else 8
    if B > 256:
        tm = min(tile_m, _round_up(pl.cdiv(B, 2), 128))
    else:
        tm = min(tile_m, _round_up(B, min_rows))
    grid = (pl.cdiv(B, tm),)

    n_rows = grid[0] * tm
    flops = 2 * n_rows * D_IN * HIDDEN_PAD + 2 * n_rows * HIDDEN_PAD * N_OUT_PAD
    itemsize = jnp.dtype(compute_dtype).itemsize
    bytes_accessed = (B * D_IN * itemsize
                      + w1p.size * itemsize + w2p.size * itemsize
                      + b1p.size * 4 + b2p.size * 4
                      + B * N_OUT_PAD * itemsize)

    out = pl.pallas_call(
        mlp_kernel,
        out_shape=jax.ShapeDtypeStruct((B, N_OUT_PAD), compute_dtype),
        grid_spec=pltpu.PrefetchScalarGridSpec(
            num_scalar_prefetch=0,
            grid=grid,
            in_specs=[
                pl.BlockSpec((tm, D_IN), lambda i: (i, 0)),               # streamed x tiles
                pl.BlockSpec((D_IN, HIDDEN_PAD), lambda i: (0, 0)),       # resident w1
                pl.BlockSpec((1, HIDDEN_PAD), lambda i: (0, 0)),          # resident b1
                pl.BlockSpec((HIDDEN_PAD, N_OUT_PAD), lambda i: (0, 0)),  # resident w2
                pl.BlockSpec((1, N_OUT_PAD), lambda i: (0, 0)),           # resident b2
            ],
            out_specs=pl.BlockSpec((tm, N_OUT_PAD), lambda i: (i, 0)),
        ),
        compiler_params=pltpu.CompilerParams(
            dimension_semantics=("parallel",),   # batch axis shards across v7x TCs
            vmem_limit_bytes=48 * 1024 * 1024),
        cost_estimate=pl.CostEstimate(flops=flops, transcendentals=0,
                                      bytes_accessed=bytes_accessed),
    )(x_flat, w1p, b1p, w2p, b2p)

    # Slice off padded logit lanes; upcast (no-op for the f32 path).
    return out[:, :N_OUT].astype(jnp.float32)


def init_params(key):
    """Deterministic synthetic params mirroring nn.Linear shapes/init scale."""
    k1, k2, k3, k4 = jax.random.split(key, 4)
    lim1 = 1.0 / jnp.sqrt(784.0)
    lim2 = 1.0 / jnp.sqrt(377.0)
    w1 = jax.random.uniform(k1, (377, 784), jnp.float32, -lim1, lim1)
    b1 = jax.random.uniform(k2, (377,), jnp.float32, -lim1, lim1)
    w2 = jax.random.uniform(k3, (10, 377), jnp.float32, -lim2, lim2)
    b2 = jax.random.uniform(k4, (10,), jnp.float32, -lim2, lim2)
    return w1, b1, w2, b2


if __name__ == "__main__":
    key = jax.random.PRNGKey(0)
    kx, kp = jax.random.split(key)
    # Small MNIST-shaped batch: (B=2, C=1, H=28, W=28) NCHW like the PyTorch module.
    x = jax.random.normal(kx, (2, 1, 28, 28), jnp.float32)
    w1, b1, w2, b2 = init_params(kp)

    # Pure-JAX reference of the same forward pass.
    ref = jnp.maximum(x.reshape(2, -1) @ w1.T + b1, 0.0) @ w2.T + b2

    # Default bf16-input / f32-accumulate fast path (looser tolerance:
    # x, hidden activations and final logit store are rounded to bf16).
    params_bf16 = prepare_params(w1, b1, w2, b2)               # one-time prep
    logits_bf16 = jax.block_until_ready(mlp300k_forward(x, *params_bf16))
    assert logits_bf16.shape == (2, 10)
    assert jnp.allclose(logits_bf16, ref, atol=5e-2, rtol=5e-2)

    # f32 path (exact PyTorch-module semantics).
    params_f32 = prepare_params(w1, b1, w2, b2, jnp.float32)
    logits = jax.block_until_ready(mlp300k_forward(x, *params_f32))
    assert logits.shape == (2, 10)
    assert jnp.allclose(logits, ref, atol=1e-4, rtol=1e-4)

    print("KERNEL_OK")
</pallas_src>

<mosaic_0001>
module attributes {stable_mosaic.version = 11 : i64} {
  func.func @mlp_kernel(%arg0: i32, %arg1: memref<16x784xbf16, #tpu.memory_space<vmem>>, %arg2: memref<784x384xbf16, #tpu.memory_space<vmem>>, %arg3: memref<1x384xf32, #tpu.memory_space<vmem>>, %arg4: memref<384x128xbf16, #tpu.memory_space<vmem>>, %arg5: memref<1x128xf32, #tpu.memory_space<vmem>>, %arg6: memref<16x128xbf16, #tpu.memory_space<vmem>>) attributes {dimension_semantics = [#tpu.dimension_semantics<parallel>], iteration_bounds = array<i64: 1>, scalar_prefetch = 0 : i64, scratch_operands = 0 : i64, tpu.core_type = #tpu.core_type<tc>, window_params = [{transform_indices = @transform_0, window_bounds = array<i64: 16, 784>}, {pipeline_mode = #tpu.pipeline_mode<synchronous>, transform_indices = @transform_1, window_bounds = array<i64: 784, 384>}, {pipeline_mode = #tpu.pipeline_mode<synchronous>, transform_indices = @transform_2, window_bounds = array<i64: 1, 384>}, {pipeline_mode = #tpu.pipeline_mode<synchronous>, transform_indices = @transform_3, window_bounds = array<i64: 384, 128>}, {pipeline_mode = #tpu.pipeline_mode<synchronous>, transform_indices = @transform_4, window_bounds = array<i64: 1, 128>}, {transform_indices = @transform_5, window_bounds = array<i64: 16, 128>}]} {
    %c0 = arith.constant 0 : index
    %c0_0 = arith.constant 0 : index
    %0 = vector.load %arg1[%c0, %c0_0] : memref<16x784xbf16, #tpu.memory_space<vmem>>, vector<16x784xbf16>
    %c0_1 = arith.constant 0 : index
    %c0_2 = arith.constant 0 : index
    %1 = vector.load %arg2[%c0_1, %c0_2] : memref<784x384xbf16, #tpu.memory_space<vmem>>, vector<784x384xbf16>
    %cst = arith.constant dense<0.000000e+00> : vector<16x384xf32>
    %2 = tpu.matmul %0, %1, %cst {dimension_numbers = #tpu.dot_dimension_numbers<[1], [0], [0], [1], [0, 0, 1, 1], [], []>} : vector<16x784xbf16>, vector<784x384xbf16>, vector<16x384xf32> -> vector<16x384xf32>
    %c0_3 = arith.constant 0 : index
    %c0_4 = arith.constant 0 : index
    %3 = vector.load %arg3[%c0_3, %c0_4] : memref<1x384xf32, #tpu.memory_space<vmem>>, vector<1x384xf32>
    %4 = vector.broadcast %3 : vector<1x384xf32> to vector<16x384xf32>
    %5 = arith.addf %2, %4 : vector<16x384xf32>
    %cst_5 = arith.constant 0.000000e+00 : f32
    %6 = vector.broadcast %cst_5 : f32 to vector<16x384xf32>
    %7 = arith.maximumf %5, %6 : vector<16x384xf32>
    %8 = arith.truncf %7 : vector<16x384xf32> to vector<16x384xbf16>
    %c0_6 = arith.constant 0 : index
    %c0_7 = arith.constant 0 : index
    %9 = vector.load %arg4[%c0_6, %c0_7] : memref<384x128xbf16, #tpu.memory_space<vmem>>, vector<384x128xbf16>
    %cst_8 = arith.constant dense<0.000000e+00> : vector<16x128xf32>
    %10 = tpu.matmul %8, %9, %cst_8 {dimension_numbers = #tpu.dot_dimension_numbers<[1], [0], [0], [1], [0, 0, 1, 1], [], []>} : vector<16x384xbf16>, vector<384x128xbf16>, vector<16x128xf32> -> vector<16x128xf32>
    %c0_9 = arith.constant 0 : index
    %c0_10 = arith.constant 0 : index
    %11 = vector.load %arg5[%c0_9, %c0_10] : memref<1x128xf32, #tpu.memory_space<vmem>>, vector<1x128xf32>
    %12 = vector.broadcast %11 : vector<1x128xf32> to vector<16x128xf32>
    %13 = arith.addf %10, %12 : vector<16x128xf32>
    %14 = arith.truncf %13 : vector<16x128xf32> to vector<16x128xbf16>
    %c0_11 = arith.constant 0 : index
    %c0_12 = arith.constant 0 : index
    %15 = vector.load %arg6[%c0_11, %c0_12] : memref<16x128xbf16, #tpu.memory_space<vmem>>, vector<16x128xbf16>
    tpu.vector_store %arg6[%c0_11, %c0_12], %14 {strides = array<i32>} : memref<16x128xbf16, #tpu.memory_space<vmem>>, vector<16x128xbf16>,
    return
  }
  func.func @transform_0(%arg0: i32) -> (i32, i32) {
    %c0_i32 = arith.constant 0 : i32
    %c0_i32_0 = arith.constant 0 : i32
    return %arg0, %c0_i32 : i32, i32
  }
  func.func @transform_1(%arg0: i32) -> (i32, i32) {
    %c0_i32 = arith.constant 0 : i32
    %c0_i32_0 = arith.constant 0 : i32
    %c0_i32_1 = arith.constant 0 : i32
    return %c0_i32, %c0_i32_0 : i32, i32
  }
  func.func @transform_2(%arg0: i32) -> (i32, i32) {
    %c0_i32 = arith.constant 0 : i32
    %c0_i32_0 = arith.constant 0 : i32
    %c0_i32_1 = arith.constant 0 : i32
    return %c0_i32, %c0_i32_0 : i32, i32
  }
  func.func @transform_3(%arg0: i32) -> (i32, i32) {
    %c0_i32 = arith.constant 0 : i32
    %c0_i32_0 = arith.constant 0 : i32
    %c0_i32_1 = arith.constant 0 : i32
    return %c0_i32, %c0_i32_0 : i32, i32
  }
  func.func @transform_4(%arg0: i32) -> (i32, i32) {
    %c0_i32 = arith.constant 0 : i32
    %c0_i32_0 = arith.constant 0 : i32
    %c0_i32_1 = arith.constant 0 : i32
    return %c0_i32, %c0_i32_0 : i32, i32
  }
  func.func @transform_5(%arg0: i32) -> (i32, i32) {
    %c0_i32 = arith.constant 0 : i32
    %c0_i32_0 = arith.constant 0 : i32
    return %arg0, %c0_i32 : i32, i32
  }
}

</mosaic_0001>

<llo_original>
// kernel: mlp300k_forward.1
$region0: #{mlp300k_forward.1}
  #allocation0 [shape = 'u32[]', space=smem, size = 0x4, offset = 0x4, fixed_abs, tag = 'smem constant byte address 0x4 - core index']
  #allocation1 [shape = 'u32[144,128]{1,0:T(1,128)}', space=vmem, size = 0x12000, scoped, tag = 'internal scratch']
  %s0 = inlined_call_operand.vmem [shape: bf16[2,784], index: 0, kind: input, shape index: {}]
  %s1 = inlined_call_operand.hbm [shape: bf16[784,384], index: 1, kind: input, shape index: {}]
  %s2 = inlined_call_operand.vmem [shape: f32[1,384], index: 2, kind: input, shape index: {}]
  %s3 = inlined_call_operand.hbm [shape: bf16[384,128], index: 3, kind: input, shape index: {}]
  %s4 = inlined_call_operand.vmem [shape: f32[1,128], index: 4, kind: input, shape index: {}]
  %s5 = inlined_call_operand.vmem [shape: bf16[2,128], index: 5, kind: output, shape index: {}]
  %s6 = sld [smem:[#allocation0]]
  $region68: #{mlp300k_forward.1} parent=0
    _
  %s8 = ssub.s32 1, %s6
  %s9 = scalar_select 0, %s8, %s6
  $region1: #{mlp300k_forward.1} parent=0
    #allocation2 [shape = 'u8[602112]{0}', space=vmem, size = 0x93000, scoped, tag = 'input window, operand 1, single buffered']
    #allocation3 [shape = 's32[1]{0}', space=sflag, size = 0x4, scoped, tag = 'scoped memory for mlp300k_forward.1']
    #allocation4 [shape = 'u8[98304]{0}', space=vmem, size = 0x18000, scoped, tag = 'input window, operand 3, single buffered']
    #allocation5 [shape = 's32[1]{0}', space=sflag, size = 0x4, scoped, tag = 'scoped memory for mlp300k_forward.1']
    #allocation6 [shape = 'u8[4096]{0}', space=vmem, size = 0x1000, scoped, tag = 'output window, operand 0, single buffered']
    %10 = vsyncpa [#allocation3], 0
    %11 = vsyncpa [#allocation5], 0
    // Predicated region
    $region2: #{mlp300k_forward.1} parent=1 // pred_check
      _
    $region3: #{mlp300k_forward.1} parent=1 // pred_check_branch
      %13 = sbr.rel (0) target = $region5
    $region4: #{mlp300k_forward.1} parent=1 // pred_region
      _
    $region5: #{mlp300k_forward.1} parent=1 // pred_fallthru
      _
    // Predicated region
    $region6: #{mlp300k_forward.1} parent=1 // pred_check
      _
    $region7: #{mlp300k_forward.1} parent=1 // pred_check_branch
      %15 = sbr.rel (0) target = $region9
    $region8: #{mlp300k_forward.1} parent=1 // pred_region
      %s17 = ssub.s32 18816, 18816
      %18 = vsyncadd [#allocation3], %s17
      %s19 = sshll.u32 [#allocation2], 4
      %s20 = int_to_ptr.vmem [resolvable:$true] %s19
      %25 = dma.hbm_to_vmem [thread:$0]  %s1, 18816, %s20, [#allocation3], 192, 192, 12
    $region9: #{mlp300k_forward.1} parent=1 // pred_fallthru
      _
    // Predicated region
    $region10: #{mlp300k_forward.1} parent=1 // pred_check
      _
    $region11: #{mlp300k_forward.1} parent=1 // pred_check_branch
      %27 = sbr.rel (0) target = $region13
    $region12: #{mlp300k_forward.1} parent=1 // pred_region
      _
    $region13: #{mlp300k_forward.1} parent=1 // pred_fallthru
      _
    // Predicated region
    $region14: #{mlp300k_forward.1} parent=1 // pred_check
      _
    $region15: #{mlp300k_forward.1} parent=1 // pred_check_branch
      %29 = sbr.rel (0) target = $region17
    $region16: #{mlp300k_forward.1} parent=1 // pred_region
      %s31 = ssub.s32 3072, 3072
      %32 = vsyncadd [#allocation5], %s31
      %s33 = sshll.u32 [#allocation4], 4
      %s34 = int_to_ptr.vmem [resolvable:$true] %s33
      %39 = dma.hbm_to_vmem [thread:$0]  %s3, 3072, %s34, [#allocation5], 64, 64, 4
    $region17: #{mlp300k_forward.1} parent=1 // pred_fallthru
      _
    // Predicated region
    $region18: #{mlp300k_forward.1} parent=1 // pred_check
      _
    $region19: #{mlp300k_forward.1} parent=1 // pred_check_branch
      %41 = sbr.rel (0) target = $region21
    $region20: #{mlp300k_forward.1} parent=1 // pred_region
      _
    $region21: #{mlp300k_forward.1} parent=1 // pred_fallthru
      _
    // Predicated region
    $region22: #{mlp300k_forward.1} parent=1 // pred_check
      _
    $region23: #{mlp300k_forward.1} parent=1 // pred_check_branch
      %43 = sbr.rel (0) target = $region25
    $region24: #{mlp300k_forward.1} parent=1 // pred_region
      %44 = dma.done [#allocation3], 18816
    $region25: #{mlp300k_forward.1} parent=1 // pred_fallthru
      _
    // Predicated region
    $region26: #{mlp300k_forward.1} parent=1 // pred_check
      _
    $region27: #{mlp300k_forward.1} parent=1 // pred_check_branch
      %46 = sbr.rel (0) target = $region29
    $region28: #{mlp300k_forward.1} parent=1 // pred_region
      %47 = dma.done [#allocation5], 3072
    $region29: #{mlp300k_forward.1} parent=1 // pred_fallthru
      _
    %v49 = vld [vmem:[%s0] sm:$0x7f]
    %v50 = vld [vmem:[%s0 + $0x7] sm:$0x7f]
    %v51 = vld [vmem:[%s0 + $0xe] sm:$0x7f]
    %v52 = vld [vmem:[%s0 + $0x15] sm:$0x7f]
    %v53 = vld [vmem:[%s0 + $0x1c] sm:$0x7f]
    %v54 = vld [vmem:[%s0 + $0x23] sm:$0x7f]
    %v55 = vld [vmem:[%s0 + $0x2a] sm:$0x7f]
    %v56 = vld [vmem:[%s0 + $0x31] sm:$0x7f]
    %v57 = vld [vmem:[#allocation2] sm:$0xff]
    %v58 = vld [vmem:[#allocation2 + $0x8] sm:$0xf]
    %v59 = vld [vmem:[#allocation2 + $0xc] sm:$0xff]
    %v60 = vld [vmem:[#allocation2 + $0x14] sm:$0xf]
    %v61 = vld [vmem:[#allocation2 + $0x18] sm:$0xff]
    %v62 = vld [vmem:[#allocation2 + $0x20] sm:$0xf]
    %v63 = vld [vmem:[#allocation2 + $0x24] sm:$0xff]
    %v64 = vld [vmem:[#allocation2 + $0x2c] sm:$0xf]
    %v65 = vld [vmem:[#allocation2 + $0x30] sm:$0xff]
    %v66 = vld [vmem:[#allocation2 + $0x38] sm:$0xf]
    %v67 = vld [vmem:[#allocation2 + $0x3c] sm:$0xff]
    %v68 = vld [vmem:[#allocation2 + $0x44] sm:$0xf]
    %v69 = vld [vmem:[#allocation2 + $0x48] sm:$0xff]
    %v70 = vld [vmem:[#allocation2 + $0x50] sm:$0xf]
    %v71 = vld [vmem:[#allocation2 + $0x54] sm:$0xff]
    %v72 = vld [vmem:[#allocation2 + $0x5c] sm:$0xf]
    %v73 = vld [vmem:[#allocation2 + $0x60] sm:$0xff]
    %v74 = vld [vmem:[#allocation2 + $0x68] sm:$0xf]
    %v75 = vld [vmem:[#allocation2 + $0x6c] sm:$0xff]
    %v76 = vld [vmem:[#allocation2 + $0x74] sm:$0xf]
    %v77 = vld [vmem:[#allocation2 + $0x78] sm:$0xff]
    %v78 = vld [vmem:[#allocation2 + $0x80] sm:$0xf]
    %v79 = vld [vmem:[#allocation2 + $0x84] sm:$0xff]
    %v80 = vld [vmem:[#allocation2 + $0x8c] sm:$0xf]
    %v81 = vld [vmem:[#allocation2 + $0x90] sm:$0xff]
    %v82 = vld [vmem:[#allocation2 + $0x98] sm:$0xf]
    %v83 = vld [vmem:[#allocation2 + $0x9c] sm:$0xff]
    %v84 = vld [vmem:[#allocation2 + $0xa4] sm:$0xf]
    %v85 = vld [vmem:[#allocation2 + $0xa8] sm:$0xff]
    %v86 = vld [vmem:[#allocation2 + $0xb0] sm:$0xf]
    %v87 = vld [vmem:[#allocation2 + $0xb4] sm:$0xff]
    %v88 = vld [vmem:[#allocation2 + $0xbc] sm:$0xf]
    %v89 = vld [vmem:[#allocation2 + $0xc0] sm:$0xff]
    %v90 = vld [vmem:[#allocation2 + $0xc8] sm:$0xf]
    %v91 = vld [vmem:[#allocation2 + $0xcc] sm:$0xff]
    %v92 = vld [vmem:[#allocation2 + $0xd4] sm:$0xf]
    %v93 = vld [vmem:[#allocation2 + $0xd8] sm:$0xff]
    %v94 = vld [vmem:[#allocation2 + $0xe0] sm:$0xf]
    %v95 = vld [vmem:[#allocation2 + $0xe4] sm:$0xff]
    %v96 = vld [vmem:[#allocation2 + $0xec] sm:$0xf]
    %v97 = vld [vmem:[#allocation2 + $0xf0] sm:$0xff]
    %v98 = vld [vmem:[#allocation2 + $0xf8] sm:$0xf]
    %v99 = vld [vmem:[#allocation2 + $0xfc] sm:$0xff]
    %v100 = vld [vmem:[#allocation2 + $0x104] sm:$0xf]
    %v101 = vld [vmem:[#allocation2 + $0x108] sm:$0xff]
    %v102 = vld [vmem:[#allocation2 + $0x110] sm:$0xf]
    %v103 = vld [vmem:[#allocation2 + $0x114] sm:$0xff]
    %v104 = vld [vmem:[#allocation2 + $0x11c] sm:$0xf]
    %v105 = vld [vmem:[#allocation2 + $0x120] sm:$0xff]
    %v106 = vld [vmem:[#allocation2 + $0x128] sm:$0xf]
    %v107 = vld [vmem:[#allocation2 + $0x12c] sm:$0xff]
    %v108 = vld [vmem:[#allocation2 + $0x134] sm:$0xf]
    %v109 = vld [vmem:[#allocation2 + $0x138] sm:$0xff]
    %v110 = vld [vmem:[#allocation2 + $0x140] sm:$0xf]
    %v111 = vld [vmem:[#allocation2 + $0x144] sm:$0xff]
    %v112 = vld [vmem:[#allocation2 + $0x14c] sm:$0xf]
    %v113 = vld [vmem:[#allocation2 + $0x150] sm:$0xff]
    %v114 = vld [vmem:[#allocation2 + $0x158] sm:$0xf]
    %v115 = vld [vmem:[#allocation2 + $0x15c] sm:$0xff]
    %v116 = vld [vmem:[#allocation2 + $0x164] sm:$0xf]
    %v117 = vld [vmem:[#allocation2 + $0x168] sm:$0xff]
    %v118 = vld [vmem:[#allocation2 + $0x170] sm:$0xf]
    %v119 = vld [vmem:[#allocation2 + $0x174] sm:$0xff]
    %v120 = vld [vmem:[#allocation2 + $0x17c] sm:$0xf]
    %v121 = vld [vmem:[#allocation2 + $0x180] sm:$0xff]
    %v122 = vld [vmem:[#allocation2 + $0x188] sm:$0xf]
    %v123 = vld [vmem:[#allocation2 + $0x18c] sm:$0xff]
    %v124 = vld [vmem:[#allocation2 + $0x194] sm:$0xf]
    %v125 = vld [vmem:[#allocation2 + $0x198] sm:$0xff]
    %v126 = vld [vmem:[#allocation2 + $0x1a0] sm:$0xf]
    %v127 = vld [vmem:[#allocation2 + $0x1a4] sm:$0xff]
    %v128 = vld [vmem:[#allocation2 + $0x1ac] sm:$0xf]
    %v129 = vld [vmem:[#allocation2 + $0x1b0] sm:$0xff]
    %v130 = vld [vmem:[#allocation2 + $0x1b8] sm:$0xf]
    %v131 = vld [vmem:[#allocation2 + $0x1bc] sm:$0xff]
    %v132 = vld [vmem:[#allocation2 + $0x1c4] sm:$0xf]
    %v133 = vld [vmem:[#allocation2 + $0x1c8] sm:$0xff]
    %v134 = vld [vmem:[#allocation2 + $0x1d0] sm:$0xf]
    %v135 = vld [vmem:[#allocation2 + $0x1d4] sm:$0xff]
    %v136 = vld [vmem:[#allocation2 + $0x1dc] sm:$0xf]
    %v137 = vld [vmem:[#allocation2 + $0x1e0] sm:$0xff]
    %v138 = vld [vmem:[#allocation2 + $0x1e8] sm:$0xf]
    %v139 = vld [vmem:[#allocation2 + $0x1ec] sm:$0xff]
    %v140 = vld [vmem:[#allocation2 + $0x1f4] sm:$0xf]
    %v141 = vld [vmem:[#allocation2 + $0x1f8] sm:$0xff]
    %v142 = vld [vmem:[#allocation2 + $0x200] sm:$0xf]
    %v143 = vld [vmem:[#allocation2 + $0x204] sm:$0xff]
    %v144 = vld [vmem:[#allocation2 + $0x20c] sm:$0xf]
    %v145 = vld [vmem:[#allocation2 + $0x210] sm:$0xff]
    %v146 = vld [vmem:[#allocation2 + $0x218] sm:$0xf]
    %v147 = vld [vmem:[#allocation2 + $0x21c] sm:$0xff]
    %v148 = vld [vmem:[#allocation2 + $0x224] sm:$0xf]
    %v149 = vld [vmem:[#allocation2 + $0x228] sm:$0xff]
    %v150 = vld [vmem:[#allocation2 + $0x230] sm:$0xf]
    %v151 = vld [vmem:[#allocation2 + $0x234] sm:$0xff]
    %v152 = vld [vmem:[#allocation2 + $0x23c] sm:$0xf]
    %v153 = vld [vmem:[#allocation2 + $0x240] sm:$0xff]
    %v154 = vld [vmem:[#allocation2 + $0x248] sm:$0xf]
    %v155 = vld [vmem:[#allocation2 + $0x24c] sm:$0xff]
    %v156 = vld [vmem:[#allocation2 + $0x254] sm:$0xf]
    %v157 = vld [vmem:[#allocation2 + $0x258] sm:$0xff]
    %v158 = vld [vmem:[#allocation2 + $0x260] sm:$0xf]
    %v159 = vld [vmem:[#allocation2 + $0x264] sm:$0xff]
    %v160 = vld [vmem:[#allocation2 + $0x26c] sm:$0xf]
    %v161 = vld [vmem:[#allocation2 + $0x270] sm:$0xff]
    %v162 = vld [vmem:[#allocation2 + $0x278] sm:$0xf]
    %v163 = vld [vmem:[#allocation2 + $0x27c] sm:$0xff]
    %v164 = vld [vmem:[#allocation2 + $0x284] sm:$0xf]
    %v165 = vld [vmem:[#allocation2 + $0x288] sm:$0xff]
    %v166 = vld [vmem:[#allocation2 + $0x290] sm:$0xf]
    %v167 = vld [vmem:[#allocation2 + $0x294] sm:$0xff]
    %v168 = vld [vmem:[#allocation2 + $0x29c] sm:$0xf]
    %v169 = vld [vmem:[#allocation2 + $0x2a0] sm:$0xff]
    %v170 = vld [vmem:[#allocation2 + $0x2a8] sm:$0xf]
    %v171 = vld [vmem:[#allocation2 + $0x2ac] sm:$0xff]
    %v172 = vld [vmem:[#allocation2 + $0x2b4] sm:$0xf]
    %v173 = vld [vmem:[#allocation2 + $0x2b8] sm:$0xff]
    %v174 = vld [vmem:[#allocation2 + $0x2c0] sm:$0xf]
    %v175 = vld [vmem:[#allocation2 + $0x2c4] sm:$0xff]
    %v176 = vld [vmem:[#allocation2 + $0x2cc] sm:$0xf]
    %v177 = vld [vmem:[#allocation2 + $0x2d0] sm:$0xff]
    %v178 = vld [vmem:[#allocation2 + $0x2d8] sm:$0xf]
    %v179 = vld [vmem:[#allocation2 + $0x2dc] sm:$0xff]
    %v180 = vld [vmem:[#allocation2 + $0x2e4] sm:$0xf]
    %v181 = vld [vmem:[#allocation2 + $0x2e8] sm:$0xff]
    %v182 = vld [vmem:[#allocation2 + $0x2f0] sm:$0xf]
    %v183 = vld [vmem:[#allocation2 + $0x2f4] sm:$0xff]
    %v184 = vld [vmem:[#allocation2 + $0x2fc] sm:$0xf]
    %v185 = vld [vmem:[#allocation2 + $0x300] sm:$0xff]
    %v186 = vld [vmem:[#allocation2 + $0x308] sm:$0xf]
    %v187 = vld [vmem:[#allocation2 + $0x30c] sm:$0xff]
    %v188 = vld [vmem:[#allocation2 + $0x314] sm:$0xf]
    %v189 = vld [vmem:[#allocation2 + $0x318] sm:$0xff]
    %v190 = vld [vmem:[#allocation2 + $0x320] sm:$0xf]
    %v191 = vld [vmem:[#allocation2 + $0x324] sm:$0xff]
    %v192 = vld [vmem:[#allocation2 + $0x32c] sm:$0xf]
    %v193 = vld [vmem:[#allocation2 + $0x330] sm:$0xff]
    %v194 = vld [vmem:[#allocation2 + $0x338] sm:$0xf]
    %v195 = vld [vmem:[#allocation2 + $0x33c] sm:$0xff]
    %v196 = vld [vmem:[#allocation2 + $0x344] sm:$0xf]
    %v197 = vld [vmem:[#allocation2 + $0x348] sm:$0xff]
    %v198 = vld [vmem:[#allocation2 + $0x350] sm:$0xf]
    %v199 = vld [vmem:[#allocation2 + $0x354] sm:$0xff]
    %v200 = vld [vmem:[#allocation2 + $0x35c] sm:$0xf]
    %v201 = vld [vmem:[#allocation2 + $0x360] sm:$0xff]
    %v202 = vld [vmem:[#allocation2 + $0x368] sm:$0xf]
    %v203 = vld [vmem:[#allocation2 + $0x36c] sm:$0xff]
    %v204 = vld [vmem:[#allocation2 + $0x374] sm:$0xf]
    %v205 = vld [vmem:[#allocation2 + $0x378] sm:$0xff]
    %v206 = vld [vmem:[#allocation2 + $0x380] sm:$0xf]
    %v207 = vld [vmem:[#allocation2 + $0x384] sm:$0xff]
    %v208 = vld [vmem:[#allocation2 + $0x38c] sm:$0xf]
    %v209 = vld [vmem:[#allocation2 + $0x390] sm:$0xff]
    %v210 = vld [vmem:[#allocation2 + $0x398] sm:$0xf]
    %v211 = vld [vmem:[#allocation2 + $0x39c] sm:$0xff]
    %v212 = vld [vmem:[#allocation2 + $0x3a4] sm:$0xf]
    %v213 = vld [vmem:[#allocation2 + $0x3a8] sm:$0xff]
    %v214 = vld [vmem:[#allocation2 + $0x3b0] sm:$0xf]
    %v215 = vld [vmem:[#allocation2 + $0x3b4] sm:$0xff]
    %v216 = vld [vmem:[#allocation2 + $0x3bc] sm:$0xf]
    %v217 = vld [vmem:[#allocation2 + $0x3c0] sm:$0xff]
    %v218 = vld [vmem:[#allocation2 + $0x3c8] sm:$0xf]
    %v219 = vld [vmem:[#allocation2 + $0x3cc] sm:$0xff]
    %v220 = vld [vmem:[#allocation2 + $0x3d4] sm:$0xf]
    %v221 = vld [vmem:[#allocation2 + $0x3d8] sm:$0xff]
    %v222 = vld [vmem:[#allocation2 + $0x3e0] sm:$0xf]
    %v223 = vld [vmem:[#allocation2 + $0x3e4] sm:$0xff]
    %v224 = vld [vmem:[#allocation2 + $0x3ec] sm:$0xf]
    %v225 = vld [vmem:[#allocation2 + $0x3f0] sm:$0xff]
    %v226 = vld [vmem:[#allocation2 + $0x3f8] sm:$0xf]
    %v227 = vld [vmem:[#allocation2 + $0x3fc] sm:$0xff]
    %v228 = vld [vmem:[#allocation2 + $0x404] sm:$0xf]
    %v229 = vld [vmem:[#allocation2 + $0x408] sm:$0xff]
    %v230 = vld [vmem:[#allocation2 + $0x410] sm:$0xf]
    %v231 = vld [vmem:[#allocation2 + $0x414] sm:$0xff]
    %v232 = vld [vmem:[#allocation2 + $0x41c] sm:$0xf]
    %v233 = vld [vmem:[#allocation2 + $0x420] sm:$0xff]
    %v234 = vld [vmem:[#allocation2 + $0x428] sm:$0xf]
    %v235 = vld [vmem:[#allocation2 + $0x42c] sm:$0xff]
    %v236 = vld [vmem:[#allocation2 + $0x434] sm:$0xf]
    %v237 = vld [vmem:[#allocation2 + $0x438] sm:$0xff]
    %v238 = vld [vmem:[#allocation2 + $0x440] sm:$0xf]
    %v239 = vld [vmem:[#allocation2 + $0x444] sm:$0xff]
    %v240 = vld [vmem:[#allocation2 + $0x44c] sm:$0xf]
    %v241 = vld [vmem:[#allocation2 + $0x450] sm:$0xff]
    %v242 = vld [vmem:[#allocation2 + $0x458] sm:$0xf]
    %v243 = vld [vmem:[#allocation2 + $0x45c] sm:$0xff]
    %v244 = vld [vmem:[#allocation2 + $0x464] sm:$0xf]
    %v245 = vld [vmem:[#allocation2 + $0x468] sm:$0xff]
    %v246 = vld [vmem:[#allocation2 + $0x470] sm:$0xf]
    %v247 = vld [vmem:[#allocation2 + $0x474] sm:$0xff]
    %v248 = vld [vmem:[#allocation2 + $0x47c] sm:$0xf]
    %v249 = vld [vmem:[#allocation2 + $0x480] sm:$0xff]
    %v250 = vld [vmem:[#allocation2 + $0x488] sm:$0xf]
    %v251 = vld [vmem:[#allocation2 + $0x48c] sm:$0xff]
    %v252 = vld [vmem:[#allocation2 + $0x494] sm:$0xf]
    %v253 = vld [vmem:[%s2] sm:$0x7]
    %v255 = vlaneseq
    %v256 = vshrl.u32 %v255, 7
    %v257 = vsub.s32 0, %v256
    %v258 = vrot.slane %v253, %v257
    %v259 = vlaneseq
    %v260 = vshrl.u32 %v259, 7
    %v261 = vsub.s32 1, %v260
    %v262 = vrot.slane %v253, %v261
    %v263 = vlaneseq
    %v264 = vshrl.u32 %v263, 7
    %v265 = vsub.s32 2, %v264
    %v266 = vrot.slane %v253, %v265
    %v278 = vcombine.low %v49, %v50
    %v279 = vcombine.high %v49, %v50
    %v280 = vcombine.low %v51, %v52
    %v281 = vcombine.high %v51, %v52
    %v282 = vcombine.low %v53, %v54
    %v283 = vcombine.high %v53, %v54
    %v284 = vcombine.low %v55, %v56
    %v285 = vcombine.high %v55, %v56
    %v287 = vunpack.c.l.s4 1966171168
    %v288 = vunpack.c.0.s8 %v287
    %v289 = vlaneseq
    %v290 = vshrl.u32 %v289, 7
    %v291 = vsub.s32 %v288, %v290
    %v292 = vrot.slane %v278, %v291
    %v294 = vunpack.c.l.s4 1966171168
    %v295 = vunpack.c.0.s8 %v294
    %v296 = vlaneseq
    %v297 = vshrl.u32 %v296, 7
    %v298 = vsub.s32 %v295, %v297
    %v299 = vrot.slane %v279, %v298
    %v301 = vunpack.c.l.s4 1966171168
    %v302 = vunpack.c.0.s8 %v301
    %v303 = vlaneseq
    %v304 = vshrl.u32 %v303, 7
    %v305 = vsub.s32 %v302, %v304
    %v306 = vrot.slane %v280, %v305
    %v308 = vunpack.c.l.s4 1966171168
    %v309 = vunpack.c.0.s8 %v308
    %v310 = vlaneseq
    %v311 = vshrl.u32 %v310, 7
    %v312 = vsub.s32 %v309, %v311
    %v313 = vrot.slane %v281, %v312
    %v315 = vunpack.c.l.s4 1966171168
    %v316 = vunpack.c.0.s8 %v315
    %v317 = vlaneseq
    %v318 = vshrl.u32 %v317, 7
    %v319 = vsub.s32 %v316, %v318
    %v320 = vrot.slane %v282, %v319
    %v322 = vunpack.c.l.s4 1966171168
    %v323 = vunpack.c.0.s8 %v322
    %v324 = vlaneseq
    %v325 = vshrl.u32 %v324, 7
    %v326 = vsub.s32 %v323, %v325
    %v327 = vrot.slane %v283, %v326
    %v329 = vunpack.c.l.s4 1966171168
    %v330 = vunpack.c.0.s8 %v329
    %v331 = vlaneseq
    %v332 = vshrl.u32 %v331, 7
    %v333 = vsub.s32 %v330, %v332
    %v334 = vrot.slane %v284, %v333
    %v336 = vunpack.c.l.s4 1966171168
    %v337 = vunpack.c.0.s8 %v336
    %v338 = vlaneseq
    %v339 = vshrl.u32 %v338, 7
    %v340 = vsub.s32 %v337, %v339
    %v341 = vrot.slane %v285, %v340
    %v342 = vcombine.low %v292, %v306
    %v343 = vcombine.high %v292, %v306
    %v344 = vcombine.low %v299, %v313
    %v345 = vcombine.high %v299, %v313
    %v346 = vcombine.low %v320, %v334
    %v347 = vcombine.high %v320, %v334
    %v348 = vcombine.low %v327, %v341
    %v349 = vcombine.high %v327, %v341
    %v351 = vunpack.c.l.s4 1966171168
    %v352 = vunpack.c.0.s8 %v351
    %v353 = vlaneseq
    %v354 = vshrl.u32 %v353, 7
    %v355 = vsub.s32 %v352, %v354
    %v356 = vrot.slane %v342, %v355
    %v358 = vunpack.c.l.s4 1966171168
    %v359 = vunpack.c.0.s8 %v358
    %v360 = vlaneseq
    %v361 = vshrl.u32 %v360, 7
    %v362 = vsub.s32 %v359, %v361
    %v363 = vrot.slane %v344, %v362
    %v365 = vunpack.c.l.s4 1966171168
    %v366 = vunpack.c.0.s8 %v365
    %v367 = vlaneseq
    %v368 = vshrl.u32 %v367, 7
    %v369 = vsub.s32 %v366, %v368
    %v370 = vrot.slane %v343, %v369
    %v372 = vunpack.c.l.s4 1966171168
    %v373 = vunpack.c.0.s8 %v372
    %v374 = vlaneseq
    %v375 = vshrl.u32 %v374, 7
    %v376 = vsub.s32 %v373, %v375
    %v377 = vrot.slane %v345, %v376
    %v379 = vunpack.c.l.s4 1966171168
    %v380 = vunpack.c.0.s8 %v379
    %v381 = vlaneseq
    %v382 = vshrl.u32 %v381, 7
    %v383 = vsub.s32 %v380, %v382
    %v384 = vrot.slane %v346, %v383
    %v386 = vunpack.c.l.s4 1966171168
    %v387 = vunpack.c.0.s8 %v386
    %v388 = vlaneseq
    %v389 = vshrl.u32 %v388, 7
    %v390 = vsub.s32 %v387, %v389
    %v391 = vrot.slane %v348, %v390
    %v393 = vunpack.c.l.s4 1966171168
    %v394 = vunpack.c.0.s8 %v393
    %v395 = vlaneseq
    %v396 = vshrl.u32 %v395, 7
    %v397 = vsub.s32 %v394, %v396
    %v398 = vrot.slane %v347, %v397
    %v400 = vunpack.c.l.s4 1966171168
    %v401 = vunpack.c.0.s8 %v400
    %v402 = vlaneseq
    %v403 = vshrl.u32 %v402, 7
    %v404 = vsub.s32 %v401, %v403
    %v405 = vrot.slane %v349, %v404
    %v406 = vcombine.low %v356, %v384
    %v407 = vcombine.high %v356, %v384
    %v408 = vcombine.low %v363, %v391
    %v409 = vcombine.high %v363, %v391
    %v410 = vcombine.low %v370, %v398
    %v411 = vcombine.high %v370, %v398
    %v412 = vcombine.low %v377, %v405
    %v615 = vunpack.c.l.b16 %v57
    %v616 = vunpack.c.h.b16 %v57
    %v617 = vunpack.c.l.b16 %v58
    %v618 = vunpack.c.l.b16 %v59
    %v619 = vunpack.c.h.b16 %v59
    %v620 = vunpack.c.l.b16 %v60
    %v621 = vunpack.c.l.b16 %v61
    %v622 = vunpack.c.h.b16 %v61
    %v623 = vunpack.c.l.b16 %v62
    %v624 = vunpack.c.l.b16 %v63
    %v625 = vunpack.c.h.b16 %v63
    %v626 = vunpack.c.l.b16 %v64
    %v627 = vunpack.c.l.b16 %v65
    %v628 = vunpack.c.h.b16 %v65
    %v629 = vunpack.c.l.b16 %v66
    %v630 = vunpack.c.l.b16 %v67
    %v631 = vunpack.c.h.b16 %v67
    %v632 = vunpack.c.l.b16 %v68
    %v633 = vunpack.c.l.b16 %v69
    %v634 = vunpack.c.h.b16 %v69
    %v635 = vunpack.c.l.b16 %v70
    %v636 = vunpack.c.l.b16 %v71
    %v637 = vunpack.c.h.b16 %v71
    %v638 = vunpack.c.l.b16 %v72
    %v639 = vunpack.c.l.b16 %v73
    %v640 = vunpack.c.h.b16 %v73
    %v641 = vunpack.c.l.b16 %v74
    %v642 = vunpack.c.l.b16 %v75
    %v643 = vunpack.c.h.b16 %v75
    %v644 = vunpack.c.l.b16 %v76
    %v645 = vunpack.c.l.b16 %v77
    %v646 = vunpack.c.h.b16 %v77
    %v647 = vunpack.c.l.b16 %v78
    %v648 = vunpack.c.l.b16 %v79
    %v649 = vunpack.c.h.b16 %v79
    %v650 = vunpack.c.l.b16 %v80
    %v651 = vunpack.c.l.b16 %v81
    %v652 = vunpack.c.h.b16 %v81
    %v653 = vunpack.c.l.b16 %v82
    %v654 = vunpack.c.l.b16 %v83
    %v655 = vunpack.c.h.b16 %v83
    %v656 = vunpack.c.l.b16 %v84
    %v657 = vunpack.c.l.b16 %v85
    %v658 = vunpack.c.h.b16 %v85
    %v659 = vunpack.c.l.b16 %v86
    %v660 = vunpack.c.l.b16 %v87
    %v661 = vunpack.c.h.b16 %v87
    %v662 = vunpack.c.l.b16 %v88
    %v663 = vunpack.c.l.b16 %v89
    %v664 = vunpack.c.h.b16 %v89
    %v665 = vunpack.c.l.b16 %v90
    %v666 = vunpack.c.l.b16 %v91
    %v667 = vunpack.c.h.b16 %v91
    %v668 = vunpack.c.l.b16 %v92
    %v669 = vunpack.c.l.b16 %v93
    %v670 = vunpack.c.h.b16 %v93
    %v671 = vunpack.c.l.b16 %v94
    %v672 = vunpack.c.l.b16 %v95
    %v673 = vunpack.c.h.b16 %v95
    %v674 = vunpack.c.l.b16 %v96
    %v675 = vunpack.c.l.b16 %v97
    %v676 = vunpack.c.h.b16 %v97
    %v677 = vunpack.c.l.b16 %v98
    %v678 = vunpack.c.l.b16 %v99
    %v679 = vunpack.c.h.b16 %v99
    %v680 = vunpack.c.l.b16 %v100
    %v681 = vunpack.c.l.b16 %v101
    %v682 = vunpack.c.h.b16 %v101
    %v683 = vunpack.c.l.b16 %v102
    %v684 = vunpack.c.l.b16 %v103
    %v685 = vunpack.c.h.b16 %v103
    %v686 = vunpack.c.l.b16 %v104
    %v687 = vunpack.c.l.b16 %v105
    %v688 = vunpack.c.h.b16 %v105
    %v689 = vunpack.c.l.b16 %v106
    %v690 = vunpack.c.l.b16 %v107
    %v691 = vunpack.c.h.b16 %v107
    %v692 = vunpack.c.l.b16 %v108
    %v693 = vunpack.c.l.b16 %v109
    %v694 = vunpack.c.h.b16 %v109
    %v695 = vunpack.c.l.b16 %v110
    %v696 = vunpack.c.l.b16 %v111
    %v697 = vunpack.c.h.b16 %v111
    %v698 = vunpack.c.l.b16 %v112
    %v699 = vunpack.c.l.b16 %v113
    %v700 = vunpack.c.h.b16 %v113
    %v701 = vunpack.c.l.b16 %v114
    %v702 = vunpack.c.l.b16 %v115
    %v703 = vunpack.c.h.b16 %v115
    %v704 = vunpack.c.l.b16 %v116
    %v705 = vunpack.c.l.b16 %v117
    %v706 = vunpack.c.h.b16 %v117
    %v707 = vunpack.c.l.b16 %v118
    %v708 = vunpack.c.l.b16 %v119
    %v709 = vunpack.c.h.b16 %v119
    %v710 = vunpack.c.l.b16 %v120
    %v711 = vunpack.c.l.b16 %v121
    %v712 = vunpack.c.h.b16 %v121
    %v713 = vunpack.c.l.b16 %v122
    %v714 = vunpack.c.l.b16 %v123
    %v715 = vunpack.c.h.b16 %v123
    %v716 = vunpack.c.l.b16 %v124
    %v717 = vunpack.c.l.b16 %v125
    %v718 = vunpack.c.h.b16 %v125
    %v719 = vunpack.c.l.b16 %v126
    %v720 = vunpack.c.l.b16 %v127
    %v721 = vunpack.c.h.b16 %v127
    %v722 = vunpack.c.l.b16 %v128
    %v723 = vunpack.c.l.b16 %v129
    %v724 = vunpack.c.h.b16 %v129
    %v725 = vunpack.c.l.b16 %v130
    %v726 = vunpack.c.l.b16 %v131
    %v727 = vunpack.c.h.b16 %v131
    %v728 = vunpack.c.l.b16 %v132
    %v729 = vunpack.c.l.b16 %v133
    %v730 = vunpack.c.h.b16 %v133
    %v731 = vunpack.c.l.b16 %v134
    %v732 = vunpack.c.l.b16 %v135
    %v733 = vunpack.c.h.b16 %v135
    %v734 = vunpack.c.l.b16 %v136
    %v735 = vunpack.c.l.b16 %v137
    %v736 = vunpack.c.h.b16 %v137
    %v737 = vunpack.c.l.b16 %v138
    %v738 = vunpack.c.l.b16 %v139
    %v739 = vunpack.c.h.b16 %v139
    %v740 = vunpack.c.l.b16 %v140
    %v741 = vunpack.c.l.b16 %v141
    %v742 = vunpack.c.h.b16 %v141
    %v743 = vunpack.c.l.b16 %v142
    %v744 = vunpack.c.l.b16 %v143
    %v745 = vunpack.c.h.b16 %v143
    %v746 = vunpack.c.l.b16 %v144
    %v747 = vunpack.c.l.b16 %v145
    %v748 = vunpack.c.h.b16 %v145
    %v749 = vunpack.c.l.b16 %v146
    %v750 = vunpack.c.l.b16 %v147
    %v751 = vunpack.c.h.b16 %v147
    %v752 = vunpack.c.l.b16 %v148
    %v753 = vunpack.c.l.b16 %v149
    %v754 = vunpack.c.h.b16 %v149
    %v755 = vunpack.c.l.b16 %v150
    %v756 = vunpack.c.l.b16 %v151
    %v757 = vunpack.c.h.b16 %v151
    %v758 = vunpack.c.l.b16 %v152
    %v759 = vunpack.c.l.b16 %v153
    %v760 = vunpack.c.h.b16 %v153
    %v761 = vunpack.c.l.b16 %v154
    %v762 = vunpack.c.l.b16 %v155
    %v763 = vunpack.c.h.b16 %v155
    %v764 = vunpack.c.l.b16 %v156
    %v765 = vunpack.c.l.b16 %v157
    %v766 = vunpack.c.h.b16 %v157
    %v767 = vunpack.c.l.b16 %v158
    %v768 = vunpack.c.l.b16 %v159
    %v769 = vunpack.c.h.b16 %v159
    %v770 = vunpack.c.l.b16 %v160
    %v771 = vunpack.c.l.b16 %v161
    %v772 = vunpack.c.h.b16 %v161
    %v773 = vunpack.c.l.b16 %v162
    %v774 = vunpack.c.l.b16 %v163
    %v775 = vunpack.c.h.b16 %v163
    %v776 = vunpack.c.l.b16 %v164
    %v777 = vunpack.c.l.b16 %v165
    %v778 = vunpack.c.h.b16 %v165
    %v779 = vunpack.c.l.b16 %v166
    %v780 = vunpack.c.l.b16 %v167
    %v781 = vunpack.c.h.b16 %v167
    %v782 = vunpack.c.l.b16 %v168
    %v783 = vunpack.c.l.b16 %v169
    %v784 = vunpack.c.h.b16 %v169
    %v785 = vunpack.c.l.b16 %v170
    %v786 = vunpack.c.l.b16 %v171
    %v787 = vunpack.c.h.b16 %v171
    %v788 = vunpack.c.l.b16 %v172
    %v789 = vunpack.c.l.b16 %v173
    %v790 = vunpack.c.h.b16 %v173
    %v791 = vunpack.c.l.b16 %v174
    %v792 = vunpack.c.l.b16 %v175
    %v793 = vunpack.c.h.b16 %v175
    %v794 = vunpack.c.l.b16 %v176
    %v795 = vunpack.c.l.b16 %v177
    %v796 = vunpack.c.h.b16 %v177
    %v797 = vunpack.c.l.b16 %v178
    %v798 = vunpack.c.l.b16 %v179
    %v799 = vunpack.c.h.b16 %v179
    %v800 = vunpack.c.l.b16 %v180
    %v801 = vunpack.c.l.b16 %v181
    %v802 = vunpack.c.h.b16 %v181
    %v803 = vunpack.c.l.b16 %v182
    %v804 = vunpack.c.l.b16 %v183
    %v805 = vunpack.c.h.b16 %v183
    %v806 = vunpack.c.l.b16 %v184
    %v807 = vunpack.c.l.b16 %v185
    %v808 = vunpack.c.h.b16 %v185
    %v809 = vunpack.c.l.b16 %v186
    %v810 = vunpack.c.l.b16 %v187
    %v811 = vunpack.c.h.b16 %v187
    %v812 = vunpack.c.l.b16 %v188
    %v813 = vunpack.c.l.b16 %v189
    %v814 = vunpack.c.h.b16 %v189
    %v815 = vunpack.c.l.b16 %v190
    %v816 = vunpack.c.l.b16 %v191
    %v817 = vunpack.c.h.b16 %v191
    %v818 = vunpack.c.l.b16 %v192
    %v819 = vunpack.c.l.b16 %v193
    %v820 = vunpack.c.h.b16 %v193
    %v821 = vunpack.c.l.b16 %v194
    %v822 = vunpack.c.l.b16 %v195
    %v823 = vunpack.c.h.b16 %v195
    %v824 = vunpack.c.l.b16 %v196
    %v825 = vunpack.c.l.b16 %v197
    %v826 = vunpack.c.h.b16 %v197
    %v827 = vunpack.c.l.b16 %v198
    %v828 = vunpack.c.l.b16 %v199
    %v829 = vunpack.c.h.b16 %v199
    %v830 = vunpack.c.l.b16 %v200
    %v831 = vunpack.c.l.b16 %v201
    %v832 = vunpack.c.h.b16 %v201
    %v833 = vunpack.c.l.b16 %v202
    %v834 = vunpack.c.l.b16 %v203
    %v835 = vunpack.c.h.b16 %v203
    %v836 = vunpack.c.l.b16 %v204
    %v837 = vunpack.c.l.b16 %v205
    %v838 = vunpack.c.h.b16 %v205
    %v839 = vunpack.c.l.b16 %v206
    %v840 = vunpack.c.l.b16 %v207
    %v841 = vunpack.c.h.b16 %v207
    %v842 = vunpack.c.l.b16 %v208
    %v843 = vunpack.c.l.b16 %v209
    %v844 = vunpack.c.h.b16 %v209
    %v845 = vunpack.c.l.b16 %v210
    %v846 = vunpack.c.l.b16 %v211
    %v847 = vunpack.c.h.b16 %v211
    %v848 = vunpack.c.l.b16 %v212
    %v849 = vunpack.c.l.b16 %v213
    %v850 = vunpack.c.h.b16 %v213
    %v851 = vunpack.c.l.b16 %v214
    %v852 = vunpack.c.l.b16 %v215
    %v853 = vunpack.c.h.b16 %v215
    %v854 = vunpack.c.l.b16 %v216
    %v855 = vunpack.c.l.b16 %v217
    %v856 = vunpack.c.h.b16 %v217
    %v857 = vunpack.c.l.b16 %v218
    %v858 = vunpack.c.l.b16 %v219
    %v859 = vunpack.c.h.b16 %v219
    %v860 = vunpack.c.l.b16 %v220
    %v861 = vunpack.c.l.b16 %v221
    %v862 = vunpack.c.h.b16 %v221
    %v863 = vunpack.c.l.b16 %v222
    %v864 = vunpack.c.l.b16 %v223
    %v865 = vunpack.c.h.b16 %v223
    %v866 = vunpack.c.l.b16 %v224
    %v867 = vunpack.c.l.b16 %v225
    %v868 = vunpack.c.h.b16 %v225
    %v869 = vunpack.c.l.b16 %v226
    %v870 = vunpack.c.l.b16 %v227
    %v871 = vunpack.c.h.b16 %v227
    %v872 = vunpack.c.l.b16 %v228
    %v873 = vunpack.c.l.b16 %v229
    %v874 = vunpack.c.h.b16 %v229
    %v875 = vunpack.c.l.b16 %v230
    %v876 = vunpack.c.l.b16 %v231
    %v877 = vunpack.c.h.b16 %v231
    %v878 = vunpack.c.l.b16 %v232
    %v879 = vunpack.c.l.b16 %v233
    %v880 = vunpack.c.h.b16 %v233
    %v881 = vunpack.c.l.b16 %v234
    %v882 = vunpack.c.l.b16 %v235
    %v883 = vunpack.c.h.b16 %v235
    %v884 = vunpack.c.l.b16 %v236
    %v885 = vunpack.c.l.b16 %v237
    %v886 = vunpack.c.h.b16 %v237
    %v887 = vunpack.c.l.b16 %v238
    %v888 = vunpack.c.l.b16 %v239
    %v889 = vunpack.c.h.b16 %v239
    %v890 = vunpack.c.l.b16 %v240
    %v891 = vunpack.c.l.b16 %v241
    %v892 = vunpack.c.h.b16 %v241
    %v893 = vunpack.c.l.b16 %v242
    %v894 = vunpack.c.l.b16 %v243
    %v895 = vunpack.c.h.b16 %v243
    %v896 = vunpack.c.l.b16 %v244
    %v897 = vunpack.c.l.b16 %v245
    %v898 = vunpack.c.h.b16 %v245
    %v899 = vunpack.c.l.b16 %v246
    %v900 = vunpack.c.l.b16 %v247
    %v901 = vunpack.c.h.b16 %v247
    %v902 = vunpack.c.l.b16 %v248
    %v903 = vunpack.c.l.b16 %v249
    %v904 = vunpack.c.h.b16 %v249
    %v905 = vunpack.c.l.b16 %v250
    %v906 = vunpack.c.l.b16 %v251
    %v907 = vunpack.c.h.b16 %v251
    %v908 = vunpack.c.l.b16 %v252
    %v909 = vpack.c.b16 %v618, %v615
    %v910 = vpack.c.b16 %v619, %v616
    %v911 = vpack.c.b16 %v620, %v617
    %v912 = vpack.c.b16 %v624, %v621
    %v913 = vpack.c.b16 %v625, %v622
    %v914 = vpack.c.b16 %v626, %v623
    %v915 = vpack.c.b16 %v630, %v627
    %v916 = vpack.c.b16 %v631, %v628
    %v917 = vpack.c.b16 %v632, %v629
    %v918 = vpack.c.b16 %v636, %v633
    %v919 = vpack.c.b16 %v637, %v634
    %v920 = vpack.c.b16 %v638, %v635
    %v921 = vpack.c.b16 %v642, %v639
    %v922 = vpack.c.b16 %v643, %v640
    %v923 = vpack.c.b16 %v644, %v641
    %v924 = vpack.c.b16 %v648, %v645
    %v925 = vpack.c.b16 %v649, %v646
    %v926 = vpack.c.b16 %v650, %v647
    %v927 = vpack.c.b16 %v654, %v651
    %v928 = vpack.c.b16 %v655, %v652
    %v929 = vpack.c.b16 %v656, %v653
    %v930 = vpack.c.b16 %v660, %v657
    %v931 = vpack.c.b16 %v661, %v658
    %v932 = vpack.c.b16 %v662, %v659
    %v933 = vpack.c.b16 %v666, %v663
    %v934 = vpack.c.b16 %v667, %v664
    %v935 = vpack.c.b16 %v668, %v665
    %v936 = vpack.c.b16 %v672, %v669
    %v937 = vpack.c.b16 %v673, %v670
    %v938 = vpack.c.b16 %v674, %v671
    %v939 = vpack.c.b16 %v678, %v675
    %v940 = vpack.c.b16 %v679, %v676
    %v941 = vpack.c.b16 %v680, %v677
    %v942 = vpack.c.b16 %v684, %v681
    %v943 = vpack.c.b16 %v685, %v682
    %v944 = vpack.c.b16 %v686, %v683
    %v945 = vpack.c.b16 %v690, %v687
    %v946 = vpack.c.b16 %v691, %v688
    %v947 = vpack.c.b16 %v692, %v689
    %v948 = vpack.c.b16 %v696, %v693
    %v949 = vpack.c.b16 %v697, %v694
    %v950 = vpack.c.b16 %v698, %v695
    %v951 = vpack.c.b16 %v702, %v699
    %v952 = vpack.c.b16 %v703, %v700
    %v953 = vpack.c.b16 %v704, %v701
    %v954 = vpack.c.b16 %v708, %v705
    %v955 = vpack.c.b16 %v709, %v706
    %v956 = vpack.c.b16 %v710, %v707
    %v957 = vpack.c.b16 %v714, %v711
    %v958 = vpack.c.b16 %v715, %v712
    %v959 = vpack.c.b16 %v716, %v713
    %v960 = vpack.c.b16 %v720, %v717
    %v961 = vpack.c.b16 %v721, %v718
    %v962 = vpack.c.b16 %v722, %v719
    %v963 = vpack.c.b16 %v726, %v723
    %v964 = vpack.c.b16 %v727, %v724
    %v965 = vpack.c.b16 %v728, %v725
    %v966 = vpack.c.b16 %v732, %v729
    %v967 = vpack.c.b16 %v733, %v730
    %v968 = vpack.c.b16 %v734, %v731
    %v969 = vpack.c.b16 %v738, %v735
    %v970 = vpack.c.b16 %v739, %v736
    %v971 = vpack.c.b16 %v740, %v737
    %v972 = vpack.c.b16 %v744, %v741
    %v973 = vpack.c.b16 %v745, %v742
    %v974 = vpack.c.b16 %v746, %v743
    %v975 = vpack.c.b16 %v750, %v747
    %v976 = vpack.c.b16 %v751, %v748
    %v977 = vpack.c.b16 %v752, %v749
    %v978 = vpack.c.b16 %v756, %v753
    %v979 = vpack.c.b16 %v757, %v754
    %v980 = vpack.c.b16 %v758, %v755
    %v981 = vpack.c.b16 %v762, %v759
    %v982 = vpack.c.b16 %v763, %v760
    %v983 = vpack.c.b16 %v764, %v761
    %v984 = vpack.c.b16 %v768, %v765
    %v985 = vpack.c.b16 %v769, %v766
    %v986 = vpack.c.b16 %v770, %v767
    %v987 = vpack.c.b16 %v774, %v771
    %v988 = vpack.c.b16 %v775, %v772
    %v989 = vpack.c.b16 %v776, %v773
    %v990 = vpack.c.b16 %v780, %v777
    %v991 = vpack.c.b16 %v781, %v778
    %v992 = vpack.c.b16 %v782, %v779
    %v993 = vpack.c.b16 %v786, %v783
    %v994 = vpack.c.b16 %v787, %v784
    %v995 = vpack.c.b16 %v788, %v785
    %v996 = vpack.c.b16 %v792, %v789
    %v997 = vpack.c.b16 %v793, %v790
    %v998 = vpack.c.b16 %v794, %v791
    %v999 = vpack.c.b16 %v798, %v795
    %v1000 = vpack.c.b16 %v799, %v796
    %v1001 = vpack.c.b16 %v800, %v797
    %v1002 = vpack.c.b16 %v804, %v801
    %v1003 = vpack.c.b16 %v805, %v802
    %v1004 = vpack.c.b16 %v806, %v803
    %v1005 = vpack.c.b16 %v810, %v807
    %v1006 = vpack.c.b16 %v811, %v808
    %v1007 = vpack.c.b16 %v812, %v809
    %v1008 = vpack.c.b16 %v816, %v813
    %v1009 = vpack.c.b16 %v817, %v814
    %v1010 = vpack.c.b16 %v818, %v815
    %v1011 = vpack.c.b16 %v822, %v819
    %v1012 = vpack.c.b16 %v823, %v820
    %v1013 = vpack.c.b16 %v824, %v821
    %v1014 = vpack.c.b16 %v828, %v825
    %v1015 = vpack.c.b16 %v829, %v826
    %v1016 = vpack.c.b16 %v830, %v827
    %v1017 = vpack.c.b16 %v834, %v831
    %v1018 = vpack.c.b16 %v835, %v832
    %v1019 = vpack.c.b16 %v836, %v833
    %v1020 = vpack.c.b16 %v840, %v837
    %v1021 = vpack.c.b16 %v841, %v838
    %v1022 = vpack.c.b16 %v842, %v839
    %v1023 = vpack.c.b16 %v846, %v843
    %v1024 = vpack.c.b16 %v847, %v844
    %v1025 = vpack.c.b16 %v848, %v845
    %v1026 = vpack.c.b16 %v852, %v849
    %v1027 = vpack.c.b16 %v853, %v850
    %v1028 = vpack.c.b16 %v854, %v851
    %v1029 = vpack.c.b16 %v858, %v855
    %v1030 = vpack.c.b16 %v859, %v856
    %v1031 = vpack.c.b16 %v860, %v857
    %v1032 = vpack.c.b16 %v864, %v861
    %v1033 = vpack.c.b16 %v865, %v862
    %v1034 = vpack.c.b16 %v866, %v863
    %v1035 = vpack.c.b16 %v870, %v867
    %v1036 = vpack.c.b16 %v871, %v868
    %v1037 = vpack.c.b16 %v872, %v869
    %v1038 = vpack.c.b16 %v876, %v873
    %v1039 = vpack.c.b16 %v877, %v874
    %v1040 = vpack.c.b16 %v878, %v875
    %v1041 = vpack.c.b16 %v882, %v879
    %v1042 = vpack.c.b16 %v883, %v880
    %v1043 = vpack.c.b16 %v884, %v881
    %v1044 = vpack.c.b16 %v888, %v885
    %v1045 = vpack.c.b16 %v889, %v886
    %v1046 = vpack.c.b16 %v890, %v887
    %v1047 = vpack.c.b16 %v894, %v891
    %v1048 = vpack.c.b16 %v895, %v892
    %v1049 = vpack.c.b16 %v896, %v893
    %v1050 = vpack.c.b16 %v900, %v897
    %v1051 = vpack.c.b16 %v901, %v898
    %v1052 = vpack.c.b16 %v902, %v899
    %v1053 = vpack.c.b16 %v906, %v903
    %v1054 = vpack.c.b16 %v907, %v904
    %v1055 = vpack.c.b16 %v908, %v905
    %vm1203 = vcmask 130048
    %v1205 = vsel %vm1203, %v409, 0
    %1207 = vmatprep.subr.bf16.mxu0 %v910
    %1208 = vmatpush1.bf16.msra.mxu0 %v909
    %1209 = vmatprep.subr.bf16.mxu0 %v913
    %1210 = vmatpush1.bf16.msra.mxu0 %v912
    %1211 = vmatprep.subr.bf16.mxu0 %v916
    %1212 = vmatpush1.bf16.msra.mxu0 %v915
    %1213 = vmatprep.subr.bf16.mxu0 %v919
    %1214 = vmatpush1.bf16.msra.mxu0 %v918
    %1215 = vmatprep.subr.bf16.mxu0 %v922
    %1216 = vmatpush1.bf16.msra.mxu0 %v921
    %1217 = vmatprep.subr.bf16.mxu0 %v925
    %1218 = vmatpush1.bf16.msra.mxu0 %v924
    %1219 = vmatprep.subr.bf16.mxu0 %v928
    %1220 = vmatpush1.bf16.msra.mxu0 %v927
    %1221 = vmatprep.subr.bf16.mxu0 %v931
    %1222 = vmatpush1.bf16.msra.mxu0 %v930
    %1223 = vmatprep.subr.bf16.mxu0 %v934
    %1224 = vmatpush1.bf16.msra.mxu0 %v933
    %1225 = vmatprep.subr.bf16.mxu0 %v937
    %1226 = vmatpush1.bf16.msra.mxu0 %v936
    %1227 = vmatprep.subr.bf16.mxu0 %v940
    %1228 = vmatpush1.bf16.msra.mxu0 %v939
    %1229 = vmatprep.subr.bf16.mxu0 %v943
    %1230 = vmatpush1.bf16.msra.mxu0 %v942
    %1231 = vmatprep.subr.bf16.mxu0 %v946
    %1232 = vmatpush1.bf16.msra.mxu0 %v945
    %1233 = vmatprep.subr.bf16.mxu0 %v949
    %1234 = vmatpush1.bf16.msra.mxu0 %v948
    %1235 = vmatprep.subr.bf16.mxu0 %v952
    %1236 = vmatpush1.bf16.msra.mxu0 %v951
    %1237 = vmatprep.subr.bf16.mxu0 %v955
    %1238 = vmatpush1.bf16.msra.mxu0 %v954
    %1239 = vmatprep.mubr.bf16.mxu0 %v410
    %1240 = vmatmul.mubr.bf16.gmra.mrb[0].mxu0 %v406
    %v1241 = vpop.f32.mrb[0].mxu0
    %v1242 = vadd.f32 %v258, %v1241
    %v1243 = vpop.f32.mrb[0].mxu0
    %v1244 = vadd.f32 %v262, %v1243
    %v1245 = vpop.f32.mrb[0].mxu0
    %v1246 = vadd.f32 %v258, %v1245
    %v1247 = vpop.f32.mrb[0].mxu0
    %v1248 = vadd.f32 %v262, %v1247
    %1249 = vdwg.mxu0
    %1250 = vmatprep.subr.bf16.mxu0 %v958
    %1251 = vmatpush1.bf16.msra.mxu0 %v957
    %1252 = vmatprep.subr.bf16.mxu0 %v961
    %1253 = vmatpush1.bf16.msra.mxu0 %v960
    %1254 = vmatprep.subr.bf16.mxu0 %v964
    %1255 = vmatpush1.bf16.msra.mxu0 %v963
    %1256 = vmatprep.subr.bf16.mxu0 %v967
    %1257 = vmatpush1.bf16.msra.mxu0 %v966
    %1258 = vmatprep.subr.bf16.mxu0 %v970
    %1259 = vmatpush1.bf16.msra.mxu0 %v969
    %1260 = vmatprep.subr.bf16.mxu0 %v973
    %1261 = vmatpush1.bf16.msra.mxu0 %v972
    %1262 = vmatprep.subr.bf16.mxu0 %v976
    %1263 = vmatpush1.bf16.msra.mxu0 %v975
    %1264 = vmatprep.subr.bf16.mxu0 %v979
    %1265 = vmatpush1.bf16.msra.mxu0 %v978
    %1266 = vmatprep.subr.bf16.mxu0 %v982
    %1267 = vmatpush1.bf16.msra.mxu0 %v981
    %1268 = vmatprep.subr.bf16.mxu0 %v985
    %1269 = vmatpush1.bf16.msra.mxu0 %v984
    %1270 = vmatprep.subr.bf16.mxu0 %v988
    %1271 = vmatpush1.bf16.msra.mxu0 %v987
    %1272 = vmatprep.subr.bf16.mxu0 %v991
    %1273 = vmatpush1.bf16.msra.mxu0 %v990
    %1274 = vmatprep.subr.bf16.mxu0 %v994
    %1275 = vmatpush1.bf16.msra.mxu0 %v993
    %1276 = vmatprep.subr.bf16.mxu0 %v997
    %1277 = vmatpush1.bf16.msra.mxu0 %v996
    %1278 = vmatprep.subr.bf16.mxu0 %v1000
    %1279 = vmatpush1.bf16.msra.mxu0 %v999
    %1280 = vmatprep.subr.bf16.mxu0 %v1003
    %1281 = vmatpush1.bf16.msra.mxu0 %v1002
    %1282 = vmatprep.mubr.bf16.mxu0 %v411
    %1283 = vmatmul.mubr.bf16.gmra.mrb[0].mxu0 %v407
    %v1284 = vpop.f32.mrb[0].mxu0
    %v1285 = vadd.f32 %v1242, %v1284
    %v1286 = vpop.f32.mrb[0].mxu0
    %v1287 = vadd.f32 %v1244, %v1286
    %v1288 = vpop.f32.mrb[0].mxu0
    %v1289 = vadd.f32 %v1246, %v1288
    %v1290 = vpop.f32.mrb[0].mxu0
    %v1291 = vadd.f32 %v1248, %v1290
    %1292 = vdwg.mxu0
    %1293 = vmatprep.subr.bf16.mxu0 %v1006
    %1294 = vmatpush1.bf16.msra.mxu0 %v1005
    %1295 = vmatprep.subr.bf16.mxu0 %v1009
    %1296 = vmatpush1.bf16.msra.mxu0 %v1008
    %1297 = vmatprep.subr.bf16.mxu0 %v1012
    %1298 = vmatpush1.bf16.msra.mxu0 %v1011
    %1299 = vmatprep.subr.bf16.mxu0 %v1015
    %1300 = vmatpush1.bf16.msra.mxu0 %v1014
    %1301 = vmatprep.subr.bf16.mxu0 %v1018
    %1302 = vmatpush1.bf16.msra.mxu0 %v1017
    %1303 = vmatprep.subr.bf16.mxu0 %v1021
    %1304 = vmatpush1.bf16.msra.mxu0 %v1020
    %1305 = vmatprep.subr.bf16.mxu0 %v1024
    %1306 = vmatpush1.bf16.msra.mxu0 %v1023
    %1307 = vmatprep.subr.bf16.mxu0 %v1027
    %1308 = vmatpush1.bf16.msra.mxu0 %v1026
    %1309 = vmatprep.subr.bf16.mxu0 %v1030
    %1310 = vmatpush1.bf16.msra.mxu0 %v1029
    %1311 = vmatprep.subr.bf16.mxu0 %v1033
    %1312 = vmatpush1.bf16.msra.mxu0 %v1032
    %1313 = vmatprep.subr.bf16.mxu0 %v1036
    %1314 = vmatpush1.bf16.msra.mxu0 %v1035
    %1315 = vmatprep.subr.bf16.mxu0 %v1039
    %1316 = vmatpush1.bf16.msra.mxu0 %v1038
    %1317 = vmatprep.subr.bf16.mxu0 %v1042
    %1318 = vmatpush1.bf16.msra.mxu0 %v1041
    %1319 = vmatprep.subr.bf16.mxu0 %v1045
    %1320 = vmatpush1.bf16.msra.mxu0 %v1044
    %1321 = vmatprep.subr.bf16.mxu0 %v1048
    %1322 = vmatpush1.bf16.msra.mxu0 %v1047
    %1323 = vmatprep.subr.bf16.mxu0 %v1051
    %1324 = vmatpush1.bf16.msra.mxu0 %v1050
    %1325 = vmatprep.mubr.bf16.mxu0 %v412
    %1326 = vmatmul.mubr.bf16.gmra.mrb[0].mxu0 %v408
    %v1327 = vpop.f32.mrb[0].mxu0
    %v1328 = vadd.f32 %v1285, %v1327
    %v1329 = vpop.f32.mrb[0].mxu0
    %v1330 = vadd.f32 %v1287, %v1329
    %v1331 = vpop.f32.mrb[0].mxu0
    %v1332 = vadd.f32 %v1289, %v1331
    %v1333 = vpop.f32.mrb[0].mxu0
    %v1334 = vadd.f32 %v1291, %v1333
    %1335 = vdwg.mxu0
    %1336 = vmatprep.subr.bf16.mxu0 %v1054
    %1337 = vmatpush1.bf16.msra.mxu0 %v1053
    %1338 = vmatprep.subr.bf16.mxu0 0
    %1339 = vmatpush1.bf16.msra.mxu0 0
    %1340 = vmatprep.subr.bf16.mxu0 0
    %1341 = vmatpush1.bf16.msra.mxu0 0
    %1342 = vmatprep.subr.bf16.mxu0 0
    %1343 = vmatpush1.bf16.msra.mxu0 0
    %1344 = vmatprep.subr.bf16.mxu0 0
    %1345 = vmatpush1.bf16.msra.mxu0 0
    %1346 = vmatprep.subr.bf16.mxu0 0
    %1347 = vmatpush1.bf16.msra.mxu0 0
    %1348 = vmatprep.subr.bf16.mxu0 0
    %1349 = vmatpush1.bf16.msra.mxu0 0
    %1350 = vmatprep.subr.bf16.mxu0 0
    %1351 = vmatpush1.bf16.msra.mxu0 0
    %1352 = vmatprep.subr.bf16.mxu0 0
    %1353 = vmatpush1.bf16.msra.mxu0 0
    %1354 = vmatprep.subr.bf16.mxu0 0
    %1355 = vmatpush1.bf16.msra.mxu0 0
    %1356 = vmatprep.subr.bf16.mxu0 0
    %1357 = vmatpush1.bf16.msra.mxu0 0
    %1358 = vmatprep.subr.bf16.mxu0 0
    %1359 = vmatpush1.bf16.msra.mxu0 0
    %1360 = vmatprep.subr.bf16.mxu0 0
    %1361 = vmatpush1.bf16.msra.mxu0 0
    %1362 = vmatprep.subr.bf16.mxu0 0
    %1363 = vmatpush1.bf16.msra.mxu0 0
    %1364 = vmatprep.subr.bf16.mxu0 0
    %1365 = vmatpush1.bf16.msra.mxu0 0
    %1366 = vmatprep.subr.bf16.mxu0 0
    %1367 = vmatpush1.bf16.msra.mxu0 0
    %1368 = vmatprep.mubr.bf16.mxu0 0
    %1369 = vmatmul.mubr.bf16.gmra.mrb[0].mxu0 %v1205
    %v1370 = vpop.f32.mrb[0].mxu0
    %v1371 = vadd.f32 %v1328, %v1370
    %v1372 = vpop.f32.mrb[0].mxu0
    %v1373 = vadd.f32 %v1330, %v1372
    %v1374 = vpop.f32.mrb[0].mxu0
    %v1375 = vadd.f32 %v1332, %v1374
    %v1376 = vpop.f32.mrb[0].mxu0
    %v1377 = vadd.f32 %v1334, %v1376
    %1378 = vdwg.mxu0
    %1379 = vmatprep.subr.bf16.mxu0 0
    %1380 = vmatpush1.bf16.msra.mxu0 %v911
    %1381 = vmatprep.subr.bf16.mxu0 0
    %1382 = vmatpush1.bf16.msra.mxu0 %v914
    %1383 = vmatprep.subr.bf16.mxu0 0
    %1384 = vmatpush1.bf16.msra.mxu0 %v917
    %1385 = vmatprep.subr.bf16.mxu0 0
    %1386 = vmatpush1.bf16.msra.mxu0 %v920
    %1387 = vmatprep.subr.bf16.mxu0 0
    %1388 = vmatpush1.bf16.msra.mxu0 %v923
    %1389 = vmatprep.subr.bf16.mxu0 0
    %1390 = vmatpush1.bf16.msra.mxu0 %v926
    %1391 = vmatprep.subr.bf16.mxu0 0
    %1392 = vmatpush1.bf16.msra.mxu0 %v929
    %1393 = vmatprep.subr.bf16.mxu0 0
    %1394 = vmatpush1.bf16.msra.mxu0 %v932
    %1395 = vmatprep.subr.bf16.mxu0 0
    %1396 = vmatpush1.bf16.msra.mxu0 %v935
    %1397 = vmatprep.subr.bf16.mxu0 0
    %1398 = vmatpush1.bf16.msra.mxu0 %v938
    %1399 = vmatprep.subr.bf16.mxu0 0
    %1400 = vmatpush1.bf16.msra.mxu0 %v941
    %1401 = vmatprep.subr.bf16.mxu0 0
    %1402 = vmatpush1.bf16.msra.mxu0 %v944
    %1403 = vmatprep.subr.bf16.mxu0 0
    %1404 = vmatpush1.bf16.msra.mxu0 %v947
    %1405 = vmatprep.subr.bf16.mxu0 0
    %1406 = vmatpush1.bf16.msra.mxu0 %v950
    %1407 = vmatprep.subr.bf16.mxu0 0
    %1408 = vmatpush1.bf16.msra.mxu0 %v953
    %1409 = vmatprep.subr.bf16.mxu0 0
    %1410 = vmatpush1.bf16.msra.mxu0 %v956
    %1411 = vmatprep.mubr.bf16.mxu0 %v410
    %1412 = vmatmul.mubr.bf16.gmra.mrb[0].mxu0 %v406
    %v1413 = vpop.f32.mrb[0].mxu0
    %v1414 = vadd.f32 %v266, %v1413
    %v1415 = vpop.f32.mrb[0].mxu0
    %v1416 = vpop.f32.mrb[0].mxu0
    %v1417 = vadd.f32 %v266, %v1416
    %v1418 = vpop.f32.mrb[0].mxu0
    %1419 = vdwg.mxu0
    %1420 = vmatprep.subr.bf16.mxu0 0
    %1421 = vmatpush1.bf16.msra.mxu0 %v959
    %1422 = vmatprep.subr.bf16.mxu0 0
    %1423 = vmatpush1.bf16.msra.mxu0 %v962
    %1424 = vmatprep.subr.bf16.mxu0 0
    %1425 = vmatpush1.bf16.msra.mxu0 %v965
    %1426 = vmatprep.subr.bf16.mxu0 0
    %1427 = vmatpush1.bf16.msra.mxu0 %v968
    %1428 = vmatprep.subr.bf16.mxu0 0
    %1429 = vmatpush1.bf16.msra.mxu0 %v971
    %1430 = vmatprep.subr.bf16.mxu0 0
    %1431 = vmatpush1.bf16.msra.mxu0 %v974
    %1432 = vmatprep.subr.bf16.mxu0 0
    %1433 = vmatpush1.bf16.msra.mxu0 %v977
    %1434 = vmatprep.subr.bf16.mxu0 0
    %1435 = vmatpush1.bf16.msra.mxu0 %v980
    %1436 = vmatprep.subr.bf16.mxu0 0
    %1437 = vmatpush1.bf16.msra.mxu0 %v983
    %1438 = vmatprep.subr.bf16.mxu0 0
    %1439 = vmatpush1.bf16.msra.mxu0 %v986
    %1440 = vmatprep.subr.bf16.mxu0 0
    %1441 = vmatpush1.bf16.msra.mxu0 %v989
    %1442 = vmatprep.subr.bf16.mxu0 0
    %1443 = vmatpush1.bf16.msra.mxu0 %v992
    %1444 = vmatprep.subr.bf16.mxu0 0
    %1445 = vmatpush1.bf16.msra.mxu0 %v995
    %1446 = vmatprep.subr.bf16.mxu0 0
    %1447 = vmatpush1.bf16.msra.mxu0 %v998
    %1448 = vmatprep.subr.bf16.mxu0 0
    %1449 = vmatpush1.bf16.msra.mxu0 %v1001
    %1450 = vmatprep.subr.bf16.mxu0 0
    %1451 = vmatpush1.bf16.msra.mxu0 %v1004
    %1452 = vmatprep.mubr.bf16.mxu0 %v411
    %1453 = vmatmul.mubr.bf16.gmra.mrb[0].mxu0 %v407
    %v1454 = vpop.f32.mrb[0].mxu0
    %v1455 = vadd.f32 %v1414, %v1454
    %v1456 = vpop.f32.mrb[0].mxu0
    %v1457 = vpop.f32.mrb[0].mxu0
    %v1458 = vadd.f32 %v1417, %v1457
    %v1459 = vpop.f32.mrb[0].mxu0
    %1460 = vdwg.mxu0
    %1461 = vmatprep.subr.bf16.mxu0 0
    %1462 = vmatpush1.bf16.msra.mxu0 %v1007
    %1463 = vmatprep.subr.bf16.mxu0 0
    %1464 = vmatpush1.bf16.msra.mxu0 %v1010
    %1465 = vmatprep.subr.bf16.mxu0 0
    %1466 = vmatpush1.bf16.msra.mxu0 %v1013
    %1467 = vmatprep.subr.bf16.mxu0 0
    %1468 = vmatpush1.bf16.msra.mxu0 %v1016
    %1469 = vmatprep.subr.bf16.mxu0 0
    %1470 = vmatpush1.bf16.msra.mxu0 %v1019
    %1471 = vmatprep.subr.bf16.mxu0 0
    %1472 = vmatpush1.bf16.msra.mxu0 %v1022
    %1473 = vmatprep.subr.bf16.mxu0 0
    %1474 = vmatpush1.bf16.msra.mxu0 %v1025
    %1475 = vmatprep.subr.bf16.mxu0 0
    %1476 = vmatpush1.bf16.msra.mxu0 %v1028
    %1477 = vmatprep.subr.bf16.mxu0 0
    %1478 = vmatpush1.bf16.msra.mxu0 %v1031
    %1479 = vmatprep.subr.bf16.mxu0 0
    %1480 = vmatpush1.bf16.msra.mxu0 %v1034
    %1481 = vmatprep.subr.bf16.mxu0 0
    %1482 = vmatpush1.bf16.msra.mxu0 %v1037
    %1483 = vmatprep.subr.bf16.mxu0 0
    %1484 = vmatpush1.bf16.msra.mxu0 %v1040
    %1485 = vmatprep.subr.bf16.mxu0 0
    %1486 = vmatpush1.bf16.msra.mxu0 %v1043
    %1487 = vmatprep.subr.bf16.mxu0 0
    %1488 = vmatpush1.bf16.msra.mxu0 %v1046
    %1489 = vmatprep.subr.bf16.mxu0 0
    %1490 = vmatpush1.bf16.msra.mxu0 %v1049
    %1491 = vmatprep.subr.bf16.mxu0 0
    %1492 = vmatpush1.bf16.msra.mxu0 %v1052
    %1493 = vmatprep.mubr.bf16.mxu0 %v412
    %1494 = vmatmul.mubr.bf16.gmra.mrb[0].mxu0 %v408
    %v1495 = vpop.f32.mrb[0].mxu0
    %v1496 = vadd.f32 %v1455, %v1495
    %v1497 = vpop.f32.mrb[0].mxu0
    %v1498 = vpop.f32.mrb[0].mxu0
    %v1499 = vadd.f32 %v1458, %v1498
    %v1500 = vpop.f32.mrb[0].mxu0
    %1501 = vdwg.mxu0
    %1502 = vmatprep.subr.bf16.mxu0 0
    %1503 = vmatpush1.bf16.msra.mxu0 %v1055
    %1504 = vmatprep.subr.bf16.mxu0 0
    %1505 = vmatpush1.bf16.msra.mxu0 0
    %1506 = vmatprep.subr.bf16.mxu0 0
    %1507 = vmatpush1.bf16.msra.mxu0 0
    %1508 = vmatprep.subr.bf16.mxu0 0
    %1509 = vmatpush1.bf16.msra.mxu0 0
    %1510 = vmatprep.subr.bf16.mxu0 0
    %1511 = vmatpush1.bf16.msra.mxu0 0
    %1512 = vmatprep.subr.bf16.mxu0 0
    %1513 = vmatpush1.bf16.msra.mxu0 0
    %1514 = vmatprep.subr.bf16.mxu0 0
    %1515 = vmatpush1.bf16.msra.mxu0 0
    %1516 = vmatprep.subr.bf16.mxu0 0
    %1517 = vmatpush1.bf16.msra.mxu0 0
    %1518 = vmatprep.subr.bf16.mxu0 0
    %1519 = vmatpush1.bf16.msra.mxu0 0
    %1520 = vmatprep.subr.bf16.mxu0 0
    %1521 = vmatpush1.bf16.msra.mxu0 0
    %1522 = vmatprep.subr.bf16.mxu0 0
    %1523 = vmatpush1.bf16.msra.mxu0 0
    %1524 = vmatprep.subr.bf16.mxu0 0
    %1525 = vmatpush1.bf16.msra.mxu0 0
    %1526 = vmatprep.subr.bf16.mxu0 0
    %1527 = vmatpush1.bf16.msra.mxu0 0
    %1528 = vmatprep.subr.bf16.mxu0 0
    %1529 = vmatpush1.bf16.msra.mxu0 0
    %1530 = vmatprep.subr.bf16.mxu0 0
    %1531 = vmatpush1.bf16.msra.mxu0 0
    %1532 = vmatprep.subr.bf16.mxu0 0
    %1533 = vmatpush1.bf16.msra.mxu0 0
    %1534 = vmatprep.mubr.bf16.mxu0 0
    %1535 = vmatmul.mubr.bf16.gmra.mrb[0].mxu0 %v1205
    %v1536 = vpop.f32.mrb[0].mxu0
    %v1537 = vadd.f32 %v1496, %v1536
    %v1538 = vpop.f32.mrb[0].mxu0
    %v1539 = vpop.f32.mrb[0].mxu0
    %v1540 = vadd.f32 %v1499, %v1539
    %v1541 = vpop.f32.mrb[0].mxu0
    %1542 = vdwg.mxu0
    %v1543 = vmax.f32 %v1371, 0.0
    %v1544 = vmax.f32 %v1373, 0.0
    %v1545 = vmax.f32 %v1537, 0.0
    %v1546 = vmax.f32 %v1375, 0.0
    %v1547 = vmax.f32 %v1377, 0.0
    %v1548 = vmax.f32 %v1540, 0.0
    %v1549 = vpack.c.bf16 %v1546, %v1543
    %v1550 = vpack.c.bf16 %v1547, %v1544
    %v1551 = vpack.c.bf16 %v1548, %v1545
    %v1552 = vld [vmem:[#allocation4] sm:$0xf]
    %v1553 = vld [vmem:[#allocation4 + $0x4] sm:$0xf]
    %v1554 = vld [vmem:[#allocation4 + $0x8] sm:$0xf]
    %v1555 = vld [vmem:[#allocation4 + $0xc] sm:$0xf]
    %v1556 = vld [vmem:[#allocation4 + $0x10] sm:$0xf]
    %v1557 = vld [vmem:[#allocation4 + $0x14] sm:$0xf]
    %v1558 = vld [vmem:[#allocation4 + $0x18] sm:$0xf]
    %v1559 = vld [vmem:[#allocation4 + $0x1c] sm:$0xf]
    %v1560 = vld [vmem:[#allocation4 + $0x20] sm:$0xf]
    %v1561 = vld [vmem:[#allocation4 + $0x24] sm:$0xf]
    %v1562 = vld [vmem:[#allocation4 + $0x28] sm:$0xf]
    %v1563 = vld [vmem:[#allocation4 + $0x2c] sm:$0xf]
    %v1564 = vld [vmem:[#allocation4 + $0x30] sm:$0xf]
    %v1565 = vld [vmem:[#allocation4 + $0x34] sm:$0xf]
    %v1566 = vld [vmem:[#allocation4 + $0x38] sm:$0xf]
    %v1567 = vld [vmem:[#allocation4 + $0x3c] sm:$0xf]
    %v1568 = vld [vmem:[#allocation4 + $0x40] sm:$0xf]
    %v1569 = vld [vmem:[#allocation4 + $0x44] sm:$0xf]
    %v1570 = vld [vmem:[#allocation4 + $0x48] sm:$0xf]
    %v1571 = vld [vmem:[#allocation4 + $0x4c] sm:$0xf]
    %v1572 = vld [vmem:[#allocation4 + $0x50] sm:$0xf]
    %v1573 = vld [vmem:[#allocation4 + $0x54] sm:$0xf]
    %v1574 = vld [vmem:[#allocation4 + $0x58] sm:$0xf]
    %v1575 = vld [vmem:[#allocation4 + $0x5c] sm:$0xf]
    %v1576 = vld [vmem:[#allocation4 + $0x60] sm:$0xf]
    %v1577 = vld [vmem:[#allocation4 + $0x64] sm:$0xf]
    %v1578 = vld [vmem:[#allocation4 + $0x68] sm:$0xf]
    %v1579 = vld [vmem:[#allocation4 + $0x6c] sm:$0xf]
    %v1580 = vld [vmem:[#allocation4 + $0x70] sm:$0xf]
    %v1581 = vld [vmem:[#allocation4 + $0x74] sm:$0xf]
    %v1582 = vld [vmem:[#allocation4 + $0x78] sm:$0xf]
    %v1583 = vld [vmem:[#allocation4 + $0x7c] sm:$0xf]
    %v1584 = vld [vmem:[#allocation4 + $0x80] sm:$0xf]
    %v1585 = vld [vmem:[#allocation4 + $0x84] sm:$0xf]
    %v1586 = vld [vmem:[#allocation4 + $0x88] sm:$0xf]
    %v1587 = vld [vmem:[#allocation4 + $0x8c] sm:$0xf]
    %v1588 = vld [vmem:[#allocation4 + $0x90] sm:$0xf]
    %v1589 = vld [vmem:[#allocation4 + $0x94] sm:$0xf]
    %v1590 = vld [vmem:[#allocation4 + $0x98] sm:$0xf]
    %v1591 = vld [vmem:[#allocation4 + $0x9c] sm:$0xf]
    %v1592 = vld [vmem:[#allocation4 + $0xa0] sm:$0xf]
    %v1593 = vld [vmem:[#allocation4 + $0xa4] sm:$0xf]
    %v1594 = vld [vmem:[#allocation4 + $0xa8] sm:$0xf]
    %v1595 = vld [vmem:[#allocation4 + $0xac] sm:$0xf]
    %v1596 = vld [vmem:[#allocation4 + $0xb0] sm:$0xf]
    %v1597 = vld [vmem:[#allocation4 + $0xb4] sm:$0xf]
    %v1598 = vld [vmem:[#allocation4 + $0xb8] sm:$0xf]
    %v1599 = vld [vmem:[#allocation4 + $0xbc] sm:$0xf]
    %v1600 = vld [vmem:[%s4] sm:$0x1]
    %v1602 = vlaneseq
    %v1603 = vshrl.u32 %v1602, 7
    %v1604 = vsub.s32 0, %v1603
    %v1605 = vrot.slane %v1600, %v1604
    %v1655 = vunpack.c.l.b16 %v1552
    %v1656 = vunpack.c.l.b16 %v1553
    %v1657 = vunpack.c.l.b16 %v1554
    %v1658 = vunpack.c.l.b16 %v1555
    %v1659 = vunpack.c.l.b16 %v1556
    %v1660 = vunpack.c.l.b16 %v1557
    %v1661 = vunpack.c.l.b16 %v1558
    %v1662 = vunpack.c.l.b16 %v1559
    %v1663 = vunpack.c.l.b16 %v1560
    %v1664 = vunpack.c.l.b16 %v1561
    %v1665 = vunpack.c.l.b16 %v1562
    %v1666 = vunpack.c.l.b16 %v1563
    %v1667 = vunpack.c.l.b16 %v1564
    %v1668 = vunpack.c.l.b16 %v1565
    %v1669 = vunpack.c.l.b16 %v1566
    %v1670 = vunpack.c.l.b16 %v1567
    %v1671 = vunpack.c.l.b16 %v1568
    %v1672 = vunpack.c.l.b16 %v1569
    %v1673 = vunpack.c.l.b16 %v1570
    %v1674 = vunpack.c.l.b16 %v1571
    %v1675 = vunpack.c.l.b16 %v1572
    %v1676 = vunpack.c.l.b16 %v1573
    %v1677 = vunpack.c.l.b16 %v1574
    %v1678 = vunpack.c.l.b16 %v1575
    %v1679 = vunpack.c.l.b16 %v1576
    %v1680 = vunpack.c.l.b16 %v1577
    %v1681 = vunpack.c.l.b16 %v1578
    %v1682 = vunpack.c.l.b16 %v1579
    %v1683 = vunpack.c.l.b16 %v1580
    %v1684 = vunpack.c.l.b16 %v1581
    %v1685 = vunpack.c.l.b16 %v1582
    %v1686 = vunpack.c.l.b16 %v1583
    %v1687 = vunpack.c.l.b16 %v1584
    %v1688 = vunpack.c.l.b16 %v1585
    %v1689 = vunpack.c.l.b16 %v1586
    %v1690 = vunpack.c.l.b16 %v1587
    %v1691 = vunpack.c.l.b16 %v1588
    %v1692 = vunpack.c.l.b16 %v1589
    %v1693 = vunpack.c.l.b16 %v1590
    %v1694 = vunpack.c.l.b16 %v1591
    %v1695 = vunpack.c.l.b16 %v1592
    %v1696 = vunpack.c.l.b16 %v1593
    %v1697 = vunpack.c.l.b16 %v1594
    %v1698 = vunpack.c.l.b16 %v1595
    %v1699 = vunpack.c.l.b16 %v1596
    %v1700 = vunpack.c.l.b16 %v1597
    %v1701 = vunpack.c.l.b16 %v1598
    %v1702 = vunpack.c.l.b16 %v1599
    %v1703 = vpack.c.b16 %v1656, %v1655
    %v1704 = vpack.c.b16 %v1658, %v1657
    %v1705 = vpack.c.b16 %v1660, %v1659
    %v1706 = vpack.c.b16 %v1662, %v1661
    %v1707 = vpack.c.b16 %v1664, %v1663
    %v1708 = vpack.c.b16 %v1666, %v1665
    %v1709 = vpack.c.b16 %v1668, %v1667
    %v1710 = vpack.c.b16 %v1670, %v1669
    %v1711 = vpack.c.b16 %v1672, %v1671
    %v1712 = vpack.c.b16 %v1674, %v1673
    %v1713 = vpack.c.b16 %v1676, %v1675
    %v1714 = vpack.c.b16 %v1678, %v1677
    %v1715 = vpack.c.b16 %v1680, %v1679
    %v1716 = vpack.c.b16 %v1682, %v1681
    %v1717 = vpack.c.b16 %v1684, %v1683
    %v1718 = vpack.c.b16 %v1686, %v1685
    %v1719 = vpack.c.b16 %v1688, %v1687
    %v1720 = vpack.c.b16 %v1690, %v1689
    %v1721 = vpack.c.b16 %v1692, %v1691
    %v1722 = vpack.c.b16 %v1694, %v1693
    %v1723 = vpack.c.b16 %v1696, %v1695
    %v1724 = vpack.c.b16 %v1698, %v1697
    %v1725 = vpack.c.b16 %v1700, %v1699
    %v1726 = vpack.c.b16 %v1702, %v1701
    %1751 = vmatprep.subr.bf16.mxu0 0
    %1752 = vmatpush1.bf16.msra.mxu0 %v1703
    %1753 = vmatprep.subr.bf16.mxu0 0
    %1754 = vmatpush1.bf16.msra.mxu0 %v1704
    %1755 = vmatprep.subr.bf16.mxu0 0
    %1756 = vmatpush1.bf16.msra.mxu0 %v1705
    %1757 = vmatprep.subr.bf16.mxu0 0
    %1758 = vmatpush1.bf16.msra.mxu0 %v1706
    %1759 = vmatprep.subr.bf16.mxu0 0
    %1760 = vmatpush1.bf16.msra.mxu0 %v1707
    %1761 = vmatprep.subr.bf16.mxu0 0
    %1762 = vmatpush1.bf16.msra.mxu0 %v1708
    %1763 = vmatprep.subr.bf16.mxu0 0
    %1764 = vmatpush1.bf16.msra.mxu0 %v1709
    %1765 = vmatprep.subr.bf16.mxu0 0
    %1766 = vmatpush1.bf16.msra.mxu0 %v1710
    %1767 = vmatprep.subr.bf16.mxu0 0
    %1768 = vmatpush1.bf16.msra.mxu0 %v1711
    %1769 = vmatprep.subr.bf16.mxu0 0
    %1770 = vmatpush1.bf16.msra.mxu0 %v1712
    %1771 = vmatprep.subr.bf16.mxu0 0
    %1772 = vmatpush1.bf16.msra.mxu0 %v1713
    %1773 = vmatprep.subr.bf16.mxu0 0
    %1774 = vmatpush1.bf16.msra.mxu0 %v1714
    %1775 = vmatprep.subr.bf16.mxu0 0
    %1776 = vmatpush1.bf16.msra.mxu0 %v1715
    %1777 = vmatprep.subr.bf16.mxu0 0
    %1778 = vmatpush1.bf16.msra.mxu0 %v1716
    %1779 = vmatprep.subr.bf16.mxu0 0
    %1780 = vmatpush1.bf16.msra.mxu0 %v1717
    %1781 = vmatprep.subr.bf16.mxu0 0
    %1782 = vmatpush1.bf16.msra.mxu0 %v1718
    %1783 = vmatprep.mubr.bf16.mxu0 %v1550
    %1784 = vmatmul.mubr.bf16.gmra.mrb[0].mxu0 %v1549
    %v1785 = vpop.f32.mrb[0].mxu0
    %v1786 = vadd.f32 %v1605, %v1785
    %v1787 = vpop.f32.mrb[0].mxu0
    %v1788 = vpop.f32.mrb[0].mxu0
    %v1789 = vadd.f32 %v1605, %v1788
    %v1790 = vpop.f32.mrb[0].mxu0
    %1791 = vdwg.mxu0
    %1792 = vmatprep.subr.bf16.mxu0 0
    %1793 = vmatpush1.bf16.msra.mxu0 %v1719
    %1794 = vmatprep.subr.bf16.mxu0 0
    %1795 = vmatpush1.bf16.msra.mxu0 %v1720
    %1796 = vmatprep.subr.bf16.mxu0 0
    %1797 = vmatpush1.bf16.msra.mxu0 %v1721
    %1798 = vmatprep.subr.bf16.mxu0 0
    %1799 = vmatpush1.bf16.msra.mxu0 %v1722
    %1800 = vmatprep.subr.bf16.mxu0 0
    %1801 = vmatpush1.bf16.msra.mxu0 %v1723
    %1802 = vmatprep.subr.bf16.mxu0 0
    %1803 = vmatpush1.bf16.msra.mxu0 %v1724
    %1804 = vmatprep.subr.bf16.mxu0 0
    %1805 = vmatpush1.bf16.msra.mxu0 %v1725
    %1806 = vmatprep.subr.bf16.mxu0 0
    %1807 = vmatpush1.bf16.msra.mxu0 %v1726
    %1808 = vmatprep.subr.bf16.mxu0 0
    %1809 = vmatpush1.bf16.msra.mxu0 0
    %1810 = vmatprep.subr.bf16.mxu0 0
    %1811 = vmatpush1.bf16.msra.mxu0 0
    %1812 = vmatprep.subr.bf16.mxu0 0
    %1813 = vmatpush1.bf16.msra.mxu0 0
    %1814 = vmatprep.subr.bf16.mxu0 0
    %1815 = vmatpush1.bf16.msra.mxu0 0
    %1816 = vmatprep.subr.bf16.mxu0 0
    %1817 = vmatpush1.bf16.msra.mxu0 0
    %1818 = vmatprep.subr.bf16.mxu0 0
    %1819 = vmatpush1.bf16.msra.mxu0 0
    %1820 = vmatprep.subr.bf16.mxu0 0
    %1821 = vmatpush1.bf16.msra.mxu0 0
    %1822 = vmatprep.subr.bf16.mxu0 0
    %1823 = vmatpush1.bf16.msra.mxu0 0
    %1824 = vmatprep.mubr.bf16.mxu0 0
    %1825 = vmatmul.mubr.bf16.gmra.mrb[0].mxu0 %v1551
    %v1826 = vpop.f32.mrb[0].mxu0
    %v1827 = vadd.f32 %v1786, %v1826
    %v1828 = vpop.f32.mrb[0].mxu0
    %v1829 = vpop.f32.mrb[0].mxu0
    %v1830 = vadd.f32 %v1789, %v1829
    %v1831 = vpop.f32.mrb[0].mxu0
    %1832 = vdwg.mxu0
    %v1833 = vpack.c.bf16 %v1830, %v1827
    %v1835 = vcombine.high %v1833, %v1833
    %v1837 = vunpack.c.l.s4 1966171168
    %v1838 = vunpack.c.0.s8 %v1837
    %v1839 = vlaneseq
    %v1840 = vshrl.u32 %v1839, 7
    %v1841 = vsub.s32 %v1838, %v1840
    %v1842 = vrot.slane %v1833, %v1841
    %v1844 = vunpack.c.l.s4 1966171168
    %v1845 = vunpack.c.0.s8 %v1844
    %v1846 = vlaneseq
    %v1847 = vshrl.u32 %v1846, 7
    %v1848 = vsub.s32 %v1845, %v1847
    %v1849 = vrot.slane %v1835, %v1848
    %v1850 = vcombine.high %v1842, %v1842
    %v1851 = vcombine.high %v1849, %v1849
    %v1853 = vunpack.c.l.s4 1966171168
    %v1854 = vunpack.c.0.s8 %v1853
    %v1855 = vlaneseq
    %v1856 = vshrl.u32 %v1855, 7
    %v1857 = vsub.s32 %v1854, %v1856
    %v1858 = vrot.slane %v1842, %v1857
    %v1860 = vunpack.c.l.s4 1966171168
    %v1861 = vunpack.c.0.s8 %v1860
    %v1862 = vlaneseq
    %v1863 = vshrl.u32 %v1862, 7
    %v1864 = vsub.s32 %v1861, %v1863
    %v1865 = vrot.slane %v1849, %v1864
    %v1867 = vunpack.c.l.s4 1966171168
    %v1868 = vunpack.c.0.s8 %v1867
    %v1869 = vlaneseq
    %v1870 = vshrl.u32 %v1869, 7
    %v1871 = vsub.s32 %v1868, %v1870
    %v1872 = vrot.slane %v1850, %v1871
    %v1874 = vunpack.c.l.s4 1966171168
    %v1875 = vunpack.c.0.s8 %v1874
    %v1876 = vlaneseq
    %v1877 = vshrl.u32 %v1876, 7
    %v1878 = vsub.s32 %v1875, %v1877
    %v1879 = vrot.slane %v1851, %v1878
    %v1880 = vcombine.high %v1858, %v1858
    %v1881 = vcombine.high %v1865, %v1865
    %v1882 = vcombine.high %v1872, %v1872
    %v1883 = vcombine.high %v1879, %v1879
    %1892 = vst [vmem:[#allocation6] sm:$0x1] %v1858
    %1893 = vst [vmem:[#allocation6 + $0x1] sm:$0x1] %v1872
    %1894 = vst [vmem:[#allocation6 + $0x2] sm:$0x1] %v1880
    %1895 = vst [vmem:[#allocation6 + $0x3] sm:$0x1] %v1882
    %1896 = vst [vmem:[#allocation6 + $0x4] sm:$0x1] %v1865
    %1897 = vst [vmem:[#allocation6 + $0x5] sm:$0x1] %v1879
    %1898 = vst [vmem:[#allocation6 + $0x6] sm:$0x1] %v1881
    %1899 = vst [vmem:[#allocation6 + $0x7] sm:$0x1] %v1883
    // Predicated region
    $region30: #{mlp300k_forward.1} parent=1 // pred_check
      _
    $region31: #{mlp300k_forward.1} parent=1 // pred_check_branch
      %1901 = sbr.rel (0) target = $region33
    $region32: #{mlp300k_forward.1} parent=1 // pred_region
      // Predicated region
      $region34: #{mlp300k_forward.1} parent=32 // pred_check
        _
      $region35: #{mlp300k_forward.1} parent=32 // pred_check_branch
        %1903 = sbr.rel (0) target = $region37
      $region36: #{mlp300k_forward.1} parent=32 // pred_region
        // Predicated region
        $region38: #{mlp300k_forward.1} parent=36 // pred_check
          _
        $region39: #{mlp300k_forward.1} parent=36 // pred_check_branch
          %1905 = sbr.rel target = $region41
        $region40: #{mlp300k_forward.1} parent=36 // pred_region
          // Predicated region
          $region53: #{mlp300k_forward.1} parent=40 // pred_check
            _
          $region54: #{mlp300k_forward.1} parent=40 // pred_check_branch
            %1920 = sbr.rel (0) target = $region56
          $region55: #{mlp300k_forward.1} parent=40 // pred_region
            loop: start=0, step=1, limit=1
            $region57: #{mlp300k_forward.1} parent=55 // loop_pre_header
              _
            $region58: #{mlp300k_forward.1} parent=55 // loop_header
              %s1923 = sphi 0, %s1927
              %p1924 = scmp.ge.s32.totalorder %s1923, 1
              %s1928 = sphi [#allocation6], [#allocation6]
              %s1929 = sphi %s5, %s5
            $region59: #{mlp300k_forward.1} parent=55 // loop_header_branch
              %1926 = sbr.rel (%p1924) target = $region63
            $region60: #{mlp300k_forward.1} parent=55 // loop_body
              %v1930 = vld [vmem:[%s1928] sm:$0x1]
              %1931 = vst [vmem:[%s1929] sm:$0x1] %v1930
            $region61: #{mlp300k_forward.1} parent=55 // loop_footer
              %s1927 = sadd.s32 1, %s1923
            $region62: #{mlp300k_forward.1} parent=55 // loop_footer_branch
              %1922 = sbr.rel target = $region58
            $region63: #{mlp300k_forward.1} parent=55 // loop_exit
              _
          $region56: #{mlp300k_forward.1} parent=40 // pred_fallthru
            _
        $region41: #{mlp300k_forward.1} parent=36 // pred_fallthru
          _
        // Predicated region
        $region42: #{mlp300k_forward.1} parent=36 // pred_check
          _
        $region43: #{mlp300k_forward.1} parent=36 // pred_check_branch
          %1907 = sbr.rel (0) target = $region45
        $region44: #{mlp300k_forward.1} parent=36 // pred_region
          loop: start=0, step=1, limit=1
          $region46: #{mlp300k_forward.1} parent=44 // loop_pre_header
            _
          $region47: #{mlp300k_forward.1} parent=44 // loop_header
            %s1910 = sphi 0, %s1914
            %p1911 = scmp.ge.s32.totalorder %s1910, 1
            %s1915 = sphi [#allocation6], [#allocation6]
            %s1916 = sphi %s5, %s5
          $region48: #{mlp300k_forward.1} parent=44 // loop_header_branch
            %1913 = sbr.rel (%p1911) target = $region52
          $region49: #{mlp300k_forward.1} parent=44 // loop_body
            %v1917 = vld [vmem:[%s1915] sm:$0x1]
            %1918 = vst [vmem:[%s1916] sm:$0x1] %v1917
          $region50: #{mlp300k_forward.1} parent=44 // loop_footer
            %s1914 = sadd.s32 1, %s1910
          $region51: #{mlp300k_forward.1} parent=44 // loop_footer_branch
            %1909 = sbr.rel target = $region47
          $region52: #{mlp300k_forward.1} parent=44 // loop_exit
            _
        $region45: #{mlp300k_forward.1} parent=36 // pred_fallthru
          _
      $region37: #{mlp300k_forward.1} parent=32 // pred_fallthru
        _
      %1932 = vnop
    $region33: #{mlp300k_forward.1} parent=1 // pred_fallthru
      _
    // Predicated region
    $region64: #{mlp300k_forward.1} parent=1 // pred_check
      _
    $region65: #{mlp300k_forward.1} parent=1 // pred_check_branch
      %1934 = sbr.rel (0) target = $region67
    $region66: #{mlp300k_forward.1} parent=1 // pred_region
      _
    $region67: #{mlp300k_forward.1} parent=1 // pred_fallthru
      _
    %1935 = vsyncpa [#allocation3], 1
    %1936 = vsyncpa [#allocation5], 1

</llo_original>
